<compile_context>
chip_gen: v6e
topology: v6e:2x2x1
jax: 0.10.0
libtpu: 0.0.40
codegen_flags: <defaults>
</compile_context>

<pallas_src>
import functools

import numpy as np

import jax
import jax.numpy as jnp
from jax.experimental import pallas as pl
from jax.experimental.pallas import tpu as pltpu

PAD_ID = 0          # constants.PAD_ID
_LANES = 128
_NEG = -1e30


def _round_up(x, m):
    return ((x + m - 1) // m) * m


# ----------------------------------------------------------------------------
# Fused conv(all filter sizes) + bias + LeakyReLU + masked max-pool + FC kernel
# ----------------------------------------------------------------------------
def _fused_cnn_kernel(x_ref, mask_ref, limit_ref, w_ref, b_ref, fcw_ref, fcb_ref,
                      o_ref, *, bB, T, E, k_max, F_pad, leaky):
    """One batch block of bB rows.

    x_ref     : (bB*T, E)        bf16  flattened (batch, time) embeddings
    mask_ref  : (bB, T)          f32   1.0 = valid token
    limit_ref : (1, T, F_pad)    f32   0 where t < t_out(branch), else -1e30
    w_ref     : (k_max*E, F_pad) bf16  stacked (tap-zero-padded) conv filters
    b_ref     : (1, F_pad)       f32
    fcw_ref   : (F_pad, out_pad) f32
    fcb_ref   : (1, out_pad)     f32
    o_ref     : (bB, out_pad)    f32
    """
    rows = bB * T
    x = x_ref[...]                                               # (rows, E) bf16
    if k_max > 1:
        x_pad = jnp.concatenate(
            [x, jnp.zeros((k_max - 1, E), x.dtype)], axis=0)     # small tail pad
    else:
        x_pad = x

    # Unrolled per-tap accumulation (no im2col LHS blowup).
    acc = jnp.zeros((rows, F_pad), jnp.float32)
    for j in range(k_max):
        acc = acc + jnp.dot(x_pad[j:j + rows, :],
                            w_ref[j * E:(j + 1) * E, :],
                            preferred_element_type=jnp.float32)

    conv = acc + b_ref[...]                                      # (rows, F_pad)
    act = jnp.where(conv > 0, conv, jnp.float32(leaky) * conv)   # LeakyReLU (f32)
    act = act.reshape(bB, T, F_pad)

    # Additive masking: per-token padding mask + static per-branch time limit.
    tok_add = jnp.where(mask_ref[...] > 0.5,
                        jnp.float32(0.0), jnp.float32(_NEG))[:, :, None]
    act = act + tok_add + limit_ref[...]                         # (bB, T, F_pad)
    feats = jnp.max(act, axis=1)                                 # (bB, F_pad)

    # Fully-padded rows: zero their features so the -1e30 sentinel never
    # reaches the FC (the rows are discarded in the wrapper anyway).
    row_valid = jnp.max(mask_ref[...], axis=1, keepdims=True) > 0.5
    feats = jnp.where(row_valid, feats, jnp.float32(0.0))

    # Fused FC epilogue (dropout is identity in eval mode).
    logits = jnp.dot(feats, fcw_ref[...], preferred_element_type=jnp.float32)
    o_ref[...] = logits + fcb_ref[...]


def _choose_batch_block(B, T, target_rows=512):
    """Pick bB so a grid step carries ~target_rows MXU rows, without over-padding
    tiny batches; always a multiple of 8 (sublane alignment for bB*T)."""
    bB = _round_up(max(8, pl.cdiv(target_rows, T)), 8)
    if B <= bB:
        bB = max(8, _round_up(B, 8))
    return bB


def cnn_head(x_emb, padding_mask, params, *, leaky, batch_block=None):
    """x_emb: (B, T, E), padding_mask: (B, T).  Returns logits (B, output)."""
    B, T, E = x_emb.shape
    filter_sizes = params["filter_sizes"]
    F = params["n_filters"]
    k_max = max(filter_sizes)
    F_pad = params["w_stack"].shape[-1]
    out_pad = params["fc_w"].shape[-1]
    out_size = params["output_size"]

    bB = batch_block if batch_block is not None else _choose_batch_block(B, T)
    B_pad = _round_up(B, bB)
    if B_pad != B:                                               # pad batch to block
        x_emb = jnp.pad(x_emb, ((0, B_pad - B), (0, 0), (0, 0)))
        padding_mask = jnp.pad(padding_mask, ((0, B_pad - B), (0, 0)))

    x_flat = x_emb.astype(jnp.bfloat16).reshape(B_pad * T, E)
    mask_f = padding_mask.astype(jnp.float32)

    # Static additive time-limit mask: 0 where t < T - k + 1 (valid conv),
    # -1e30 beyond; padded feature columns stay 0 (their conv output is 0 and
    # the padded fc_w rows are 0, so they contribute nothing).
    limit_np = np.zeros((1, T, F_pad), np.float32)
    for i, k in enumerate(filter_sizes):
        limit_np[0, T - k + 1:, i * F:(i + 1) * F] = _NEG
    limit_add = jnp.asarray(limit_np)

    kern = functools.partial(_fused_cnn_kernel, bB=bB, T=T, E=E, k_max=k_max,
                             F_pad=F_pad, leaky=leaky)
    out = pl.pallas_call(
        kern,
        out_shape=jax.ShapeDtypeStruct((B_pad, out_pad), jnp.float32),
        grid=(B_pad // bB,),
        in_specs=[
            pl.BlockSpec((bB * T, E), lambda i: (i, 0)),
            pl.BlockSpec((bB, T), lambda i: (i, 0)),
            pl.BlockSpec((1, T, F_pad), lambda i: (0, 0, 0)),
            pl.BlockSpec((k_max * E, F_pad), lambda i: (0, 0)),
            pl.BlockSpec((1, F_pad), lambda i: (0, 0)),
            pl.BlockSpec((F_pad, out_pad), lambda i: (0, 0)),
            pl.BlockSpec((1, out_pad), lambda i: (0, 0)),
        ],
        out_specs=pl.BlockSpec((bB, out_pad), lambda i: (i, 0)),
        compiler_params=pltpu.CompilerParams(
            dimension_semantics=("parallel",),
            vmem_limit_bytes=48 << 20),
    )(x_flat, mask_f, limit_add, params["w_stack"], params["bias_all"],
      params["fc_w"], params["fc_b"])
    return out[:B, :out_size]


# ----------------------------------------------------------------------------
# K-tiled matmul kernel (soft-input path: (B*T, V) @ (V, E))
# ----------------------------------------------------------------------------
def _matmul_kernel(x_ref, w_ref, o_ref, acc_ref):
    @pl.when(pl.program_id(1) == 0)
    def _():
        acc_ref[...] = jnp.zeros_like(acc_ref)
    acc_ref[...] += jnp.dot(x_ref[...], w_ref[...],
                            preferred_element_type=jnp.float32)

    @pl.when(pl.program_id(1) == pl.num_programs(1) - 1)
    def _():
        o_ref[...] = acc_ref[...].astype(o_ref.dtype)


def matmul(x, w, out_dtype=jnp.bfloat16, tm_max=256, tk_max=512):
    """x: (M, K) @ w: (K, N).  M is padded to a 16-aligned tile (bf16 sublane
    pack), K to a 128-aligned tile, so tiles always exist and a whole-vocab
    weight block can never be pulled into VMEM (v7x 64 MiB hazard)."""
    M, K = x.shape
    _, N = w.shape
    tm = min(tm_max, _round_up(M, 16))
    tk = min(tk_max, _round_up(K, 128))
    Mp, Kp = _round_up(M, tm), _round_up(K, tk)
    if (Mp, Kp) != (M, K):
        x = jnp.pad(x, ((0, Mp - M), (0, Kp - K)))
    if Kp != K:
        w = jnp.pad(w, ((0, Kp - K), (0, 0)))
    out = pl.pallas_call(
        _matmul_kernel,
        out_shape=jax.ShapeDtypeStruct((Mp, N), out_dtype),
        grid=(Mp // tm, Kp // tk),
        in_specs=[
            pl.BlockSpec((tm, tk), lambda i, k: (i, k)),
            pl.BlockSpec((tk, N), lambda i, k: (k, 0)),
        ],
        out_specs=pl.BlockSpec((tm, N), lambda i, k: (i, 0)),
        scratch_shapes=[pltpu.VMEM((tm, N), jnp.float32)],
        compiler_params=pltpu.CompilerParams(
            dimension_semantics=("parallel", "arbitrary"),
            vmem_limit_bytes=48 << 20),
    )(x, w)
    return out[:M]


# ----------------------------------------------------------------------------
# Parameters & forward
# ----------------------------------------------------------------------------
def init_params(key, vocab_size, emb_size, emb_max_norm, filter_sizes,
                n_filters, output_size):
    keys = jax.random.split(key, 1 + 2 * len(filter_sizes) + 2)
    emb = 0.1 * jax.random.normal(keys[0], (vocab_size, emb_size), jnp.float32)
    # emulate nn.Embedding(max_norm=...): renorm rows whose L2 norm exceeds max_norm
    norms = jnp.linalg.norm(emb, axis=1, keepdims=True)
    emb = emb * jnp.minimum(1.0, emb_max_norm / jnp.maximum(norms, 1e-12))
    emb = emb.at[PAD_ID].set(0.0)                    # padding_idx = constants.PAD_ID
    emb = emb.astype(jnp.bfloat16)                   # bf16 MXU/DMA operand

    k_max = max(filter_sizes)
    F = n_filters
    F_total = len(filter_sizes) * F
    F_pad = _round_up(F_total, _LANES)               # lane-dense conv channels
    out_pad = _round_up(output_size, _LANES)         # lane-dense logits store

    convs = []
    w_stack = np.zeros((k_max, emb_size, F_pad), np.float32)
    bias_all = np.zeros((1, F_pad), np.float32)
    for i, k in enumerate(filter_sizes):
        # == Conv1d weight (F, E, k) transposed to (k, E, F); stored bf16.
        w = (0.1 * jax.random.normal(keys[1 + 2 * i], (k, emb_size, F),
                                     jnp.float32)).astype(jnp.bfloat16)
        b = 0.1 * jax.random.normal(keys[2 + 2 * i], (1, F), jnp.float32)
        convs.append((w, b))
        # Zero-pad shorter filters along the tap dim and all branches along the
        # channel dim (to F_pad) so one stacked weight serves every branch.
        w_stack[:k, :, i * F:(i + 1) * F] = np.asarray(w.astype(jnp.float32))
        bias_all[:, i * F:(i + 1) * F] = np.asarray(b)
    w_stack = jnp.asarray(w_stack).astype(jnp.bfloat16).reshape(
        k_max * emb_size, F_pad)
    bias_all = jnp.asarray(bias_all)

    fc_w = 0.1 * jax.random.normal(keys[-2], (F_total, output_size), jnp.float32)
    fc_b = 0.1 * jax.random.normal(keys[-1], (1, output_size), jnp.float32)
    fc_w_pad = jnp.zeros((F_pad, out_pad), jnp.float32
                         ).at[:F_total, :output_size].set(fc_w)
    fc_b_pad = jnp.zeros((1, out_pad), jnp.float32).at[:, :output_size].set(fc_b)

    return {"emb": emb, "convs": convs,
            "w_stack": w_stack, "bias_all": bias_all,
            "fc_w": fc_w_pad, "fc_b": fc_b_pad,
            "fc_w_ref": fc_w, "fc_b_ref": fc_b,
            "filter_sizes": tuple(filter_sizes), "n_filters": n_filters,
            "output_size": output_size}


def cnn_classifier_forward(params, inputs, *, soft_input=False, leaky):
    x, padding_mask = inputs["x_b"], inputs["padding_mask_b"]
    emb_w = params["emb"]                            # (V, E) bf16
    E = emb_w.shape[1]
    if soft_input:
        # x: (B, T, V) soft one-hots -> K-tiled matmul with the embedding table.
        B, T, V = x.shape
        xe = matmul(x.astype(jnp.bfloat16).reshape(B * T, V), emb_w)
        xe = xe.reshape(B, T, E)
    else:
        xe = jnp.take(emb_w, x, axis=0)              # embedding gather (XLA glue)
    # nn.Dropout: eval mode -> identity (folded away).
    return cnn_head(xe, padding_mask, params, leaky=leaky)


# Pure-JAX reference for verification (f32 math on the bf16-rounded params).
def forward_ref(params, inputs, *, leaky):
    emb_w = params["emb"].astype(jnp.float32)
    x = emb_w[inputs["x_b"]]
    mask = inputs["padding_mask_b"]
    feats = []
    for k, (w, b) in zip(params["filter_sizes"], params["convs"]):
        w = w.astype(jnp.float32)
        t_out = x.shape[1] - k + 1
        conv = sum(jnp.einsum("bte,ef->btf", x[:, j:j + t_out, :], w[j])
                   for j in range(k)) + b[0]
        act = jnp.where(conv > 0, conv, leaky * conv)
        act = jnp.where(mask[:, :t_out, None] > 0.5, act, _NEG)
        feats.append(act.max(axis=1))
    h = jnp.concatenate(feats, axis=-1)
    return h @ params["fc_w_ref"] + params["fc_b_ref"][0]


if __name__ == "__main__":
    vocab_size, emb_size, emb_max_norm = 50, 32, 1.0
    filter_sizes = (3, 4, 5)
    n_filters = 8
    leaky = 0.1
    pad_amt = 0          # Conv1d padding (valid conv)
    dropout_rate = 0.5   # eval mode -> unused
    output_size = 4
    B, T = 2, 16

    key = jax.random.PRNGKey(0)
    k_param, k_ids = jax.random.split(key)
    params = init_params(k_param, vocab_size, emb_size, emb_max_norm,
                         filter_sizes, n_filters, output_size)

    x_ids = jax.random.randint(k_ids, (B, T), 1, vocab_size)
    lengths = jnp.array([T, 10])
    pos = jnp.arange(T)[None, :]
    padding_mask = (pos < lengths[:, None]).astype(jnp.float32)  # 1 = valid token
    x_ids = jnp.where(padding_mask > 0, x_ids, PAD_ID)

    inputs = {"x_b": x_ids, "padding_mask_b": padding_mask}
    logits = cnn_classifier_forward(params, inputs, leaky=leaky)
    logits = jax.block_until_ready(logits)

    ref = forward_ref(params, inputs, leaky=leaky)
    assert logits.shape == (B, output_size), logits.shape
    assert jnp.allclose(logits, ref, atol=2e-3, rtol=2e-3), (logits, ref)

    # soft_input path: exact one-hots must reproduce the hard-id logits.
    x_soft = jax.nn.one_hot(x_ids, vocab_size, dtype=jnp.float32)
    logits_soft = cnn_classifier_forward(
        params, {"x_b": x_soft, "padding_mask_b": padding_mask},
        soft_input=True, leaky=leaky)
    logits_soft = jax.block_until_ready(logits_soft)
    assert jnp.allclose(logits_soft, logits, atol=2e-3, rtol=2e-3), (
        logits_soft, logits)

    print("KERNEL_OK")
</pallas_src>

<mosaic_0001>
module attributes {stable_mosaic.version = 11 : i64} {
  func.func @_fused_cnn_kernel(%arg0: i32, %arg1: memref<128x32xbf16, #tpu.memory_space<vmem>>, %arg2: memref<8x16xf32, #tpu.memory_space<vmem>>, %arg3: memref<1x16x128xf32, #tpu.memory_space<vmem>>, %arg4: memref<160x128xbf16, #tpu.memory_space<vmem>>, %arg5: memref<1x128xf32, #tpu.memory_space<vmem>>, %arg6: memref<128x128xf32, #tpu.memory_space<vmem>>, %arg7: memref<1x128xf32, #tpu.memory_space<vmem>>, %arg8: memref<8x128xf32, #tpu.memory_space<vmem>>) attributes {dimension_semantics = [#tpu.dimension_semantics<parallel>], iteration_bounds = array<i64: 1>, scalar_prefetch = 0 : i64, scratch_operands = 0 : i64, tpu.core_type = #tpu.core_type<tc>, window_params = [{transform_indices = @transform_0, window_bounds = array<i64: 128, 32>}, {transform_indices = @transform_1, window_bounds = array<i64: 8, 16>}, {pipeline_mode = #tpu.pipeline_mode<synchronous>, transform_indices = @transform_2, window_bounds = array<i64: 1, 16, 128>}, {pipeline_mode = #tpu.pipeline_mode<synchronous>, transform_indices = @transform_3, window_bounds = array<i64: 160, 128>}, {pipeline_mode = #tpu.pipeline_mode<synchronous>, transform_indices = @transform_4, window_bounds = array<i64: 1, 128>}, {pipeline_mode = #tpu.pipeline_mode<synchronous>, transform_indices = @transform_5, window_bounds = array<i64: 128, 128>}, {pipeline_mode = #tpu.pipeline_mode<synchronous>, transform_indices = @transform_6, window_bounds = array<i64: 1, 128>}, {transform_indices = @transform_7, window_bounds = array<i64: 8, 128>}]} {
    %c0 = arith.constant 0 : index
    %c0_0 = arith.constant 0 : index
    %0 = vector.load %arg1[%c0, %c0_0] : memref<128x32xbf16, #tpu.memory_space<vmem>>, vector<128x32xbf16>
    %cst = arith.constant 0.000000e+00 : bf16
    %1 = vector.broadcast %cst : bf16 to vector<4x32xbf16>
    %2 = tpu.concatenate %0, %1 in 0 : vector<128x32xbf16>, vector<4x32xbf16> -> vector<132x32xbf16>
    %cst_1 = arith.constant 0.000000e+00 : f32
    %3 = vector.broadcast %cst_1 : f32 to vector<128x128xf32>
    %4 = vector.extract_strided_slice %2 {offsets = [0, 0], sizes = [128, 32], strides = [1, 1]} : vector<132x32xbf16> to vector<128x32xbf16>
    %c0_2 = arith.constant 0 : index
    %c0_3 = arith.constant 0 : index
    %5 = vector.load %arg4[%c0_2, %c0_3] : memref<160x128xbf16, #tpu.memory_space<vmem>>, vector<32x128xbf16>
    %cst_4 = arith.constant dense<0.000000e+00> : vector<128x128xf32>
    %6 = tpu.matmul %4, %5, %cst_4 {dimension_numbers = #tpu.dot_dimension_numbers<[1], [0], [0], [1], [0, 0, 1, 1], [], []>} : vector<128x32xbf16>, vector<32x128xbf16>, vector<128x128xf32> -> vector<128x128xf32>
    %7 = arith.addf %3, %6 : vector<128x128xf32>
    %8 = vector.extract_strided_slice %2 {offsets = [1, 0], sizes = [128, 32], strides = [1, 1]} : vector<132x32xbf16> to vector<128x32xbf16>
    %c32 = arith.constant 32 : index
    %c0_5 = arith.constant 0 : index
    %9 = vector.load %arg4[%c32, %c0_5] : memref<160x128xbf16, #tpu.memory_space<vmem>>, vector<32x128xbf16>
    %cst_6 = arith.constant dense<0.000000e+00> : vector<128x128xf32>
    %10 = tpu.matmul %8, %9, %cst_6 {dimension_numbers = #tpu.dot_dimension_numbers<[1], [0], [0], [1], [0, 0, 1, 1], [], []>} : vector<128x32xbf16>, vector<32x128xbf16>, vector<128x128xf32> -> vector<128x128xf32>
    %11 = arith.addf %7, %10 : vector<128x128xf32>
    %12 = vector.extract_strided_slice %2 {offsets = [2, 0], sizes = [128, 32], strides = [1, 1]} : vector<132x32xbf16> to vector<128x32xbf16>
    %c64 = arith.constant 64 : index
    %c0_7 = arith.constant 0 : index
    %13 = vector.load %arg4[%c64, %c0_7] : memref<160x128xbf16, #tpu.memory_space<vmem>>, vector<32x128xbf16>
    %cst_8 = arith.constant dense<0.000000e+00> : vector<128x128xf32>
    %14 = tpu.matmul %12, %13, %cst_8 {dimension_numbers = #tpu.dot_dimension_numbers<[1], [0], [0], [1], [0, 0, 1, 1], [], []>} : vector<128x32xbf16>, vector<32x128xbf16>, vector<128x128xf32> -> vector<128x128xf32>
    %15 = arith.addf %11, %14 : vector<128x128xf32>
    %16 = vector.extract_strided_slice %2 {offsets = [3, 0], sizes = [128, 32], strides = [1, 1]} : vector<132x32xbf16> to vector<128x32xbf16>
    %c96 = arith.constant 96 : index
    %c0_9 = arith.constant 0 : index
    %17 = vector.load %arg4[%c96, %c0_9] : memref<160x128xbf16, #tpu.memory_space<vmem>>, vector<32x128xbf16>
    %cst_10 = arith.constant dense<0.000000e+00> : vector<128x128xf32>
    %18 = tpu.matmul %16, %17, %cst_10 {dimension_numbers = #tpu.dot_dimension_numbers<[1], [0], [0], [1], [0, 0, 1, 1], [], []>} : vector<128x32xbf16>, vector<32x128xbf16>, vector<128x128xf32> -> vector<128x128xf32>
    %19 = arith.addf %15, %18 : vector<128x128xf32>
    %20 = vector.extract_strided_slice %2 {offsets = [4, 0], sizes = [128, 32], strides = [1, 1]} : vector<132x32xbf16> to vector<128x32xbf16>
    %c128 = arith.constant 128 : index
    %c0_11 = arith.constant 0 : index
    %21 = vector.load %arg4[%c128, %c0_11] : memref<160x128xbf16, #tpu.memory_space<vmem>>, vector<32x128xbf16>
    %cst_12 = arith.constant dense<0.000000e+00> : vector<128x128xf32>
    %22 = tpu.matmul %20, %21, %cst_12 {dimension_numbers = #tpu.dot_dimension_numbers<[1], [0], [0], [1], [0, 0, 1, 1], [], []>} : vector<128x32xbf16>, vector<32x128xbf16>, vector<128x128xf32> -> vector<128x128xf32>
    %23 = arith.addf %19, %22 : vector<128x128xf32>
    %c0_13 = arith.constant 0 : index
    %c0_14 = arith.constant 0 : index
    %24 = vector.load %arg5[%c0_13, %c0_14] : memref<1x128xf32, #tpu.memory_space<vmem>>, vector<1x128xf32>
    %25 = vector.broadcast %24 : vector<1x128xf32> to vector<128x128xf32>
    %26 = arith.addf %23, %25 : vector<128x128xf32>
    %cst_15 = arith.constant 0.000000e+00 : f32
    %27 = vector.broadcast %cst_15 : f32 to vector<128x128xf32>
    %28 = arith.cmpf ogt, %26, %27 : vector<128x128xf32>
    %cst_16 = arith.constant 1.000000e-01 : f32
    %29 = vector.broadcast %cst_16 : f32 to vector<128x128xf32>
    %30 = arith.mulf %29, %26 : vector<128x128xf32>
    %31 = arith.select %28, %26, %30 : vector<128x128xi1>, vector<128x128xf32>
    %32 = vector.shape_cast %31 : vector<128x128xf32> to vector<8x16x128xf32>
    %c0_17 = arith.constant 0 : index
    %c0_18 = arith.constant 0 : index
    %33 = vector.load %arg2[%c0_17, %c0_18] : memref<8x16xf32, #tpu.memory_space<vmem>>, vector<8x16xf32>
    %cst_19 = arith.constant 5.000000e-01 : f32
    %34 = vector.broadcast %cst_19 : f32 to vector<8x16xf32>
    %35 = arith.cmpf ogt, %33, %34 : vector<8x16xf32>
    %cst_20 = arith.constant 0.000000e+00 : f32
    %cst_21 = arith.constant -1.000000e+30 : f32
    %36 = vector.broadcast %cst_20 : f32 to vector<8x16xf32>
    %37 = vector.broadcast %cst_21 : f32 to vector<8x16xf32>
    %38 = arith.select %35, %36, %37 : vector<8x16xi1>, vector<8x16xf32>
    %39 = vector.shape_cast %38 : vector<8x16xf32> to vector<8x16x1xf32>
    %40 = vector.broadcast %39 : vector<8x16x1xf32> to vector<8x16x128xf32>
    %41 = arith.addf %32, %40 : vector<8x16x128xf32>
    %c0_22 = arith.constant 0 : index
    %c0_23 = arith.constant 0 : index
    %c0_24 = arith.constant 0 : index
    %42 = vector.load %arg3[%c0_22, %c0_23, %c0_24] : memref<1x16x128xf32, #tpu.memory_space<vmem>>, vector<1x16x128xf32>
    %43 = vector.broadcast %42 : vector<1x16x128xf32> to vector<8x16x128xf32>
    %44 = arith.addf %41, %43 : vector<8x16x128xf32>
    %cst_25 = arith.constant dense<0xFF800000> : vector<8x128xf32>
    %45 = vector.multi_reduction <maximumf>, %44, %cst_25 [1] : vector<8x16x128xf32> to vector<8x128xf32>
    %c0_26 = arith.constant 0 : index
    %c0_27 = arith.constant 0 : index
    %46 = vector.load %arg2[%c0_26, %c0_27] : memref<8x16xf32, #tpu.memory_space<vmem>>, vector<8x16xf32>
    %cst_28 = arith.constant dense<0xFF800000> : vector<8xf32>
    %47 = vector.multi_reduction <maximumf>, %46, %cst_28 [1] : vector<8x16xf32> to vector<8xf32>
    %48 = vector.shape_cast %47 : vector<8xf32> to vector<8x1xf32>
    %cst_29 = arith.constant 5.000000e-01 : f32
    %49 = vector.broadcast %cst_29 : f32 to vector<8x1xf32>
    %50 = arith.cmpf ogt, %48, %49 : vector<8x1xf32>
    %cst_30 = arith.constant 0.000000e+00 : f32
    %51 = vector.shape_cast %50 : vector<8x1xi1> to vector<8x1xi1>
    %52 = vector.broadcast %51 : vector<8x1xi1> to vector<8x128xi1>
    %53 = vector.broadcast %cst_30 : f32 to vector<8x128xf32>
    %54 = arith.select %52, %45, %53 : vector<8x128xi1>, vector<8x128xf32>
    %c0_31 = arith.constant 0 : index
    %c0_32 = arith.constant 0 : index
    %55 = vector.load %arg6[%c0_31, %c0_32] : memref<128x128xf32, #tpu.memory_space<vmem>>, vector<128x128xf32>
    %cst_33 = arith.constant dense<0.000000e+00> : vector<8x128xf32>
    %56 = tpu.matmul %54, %55, %cst_33 {dimension_numbers = #tpu.dot_dimension_numbers<[1], [0], [0], [1], [0, 0, 1, 1], [], []>} : vector<8x128xf32>, vector<128x128xf32>, vector<8x128xf32> -> vector<8x128xf32>
    %c0_34 = arith.constant 0 : index
    %c0_35 = arith.constant 0 : index
    %57 = vector.load %arg7[%c0_34, %c0_35] : memref<1x128xf32, #tpu.memory_space<vmem>>, vector<1x128xf32>
    %58 = vector.broadcast %57 : vector<1x128xf32> to vector<8x128xf32>
    %59 = arith.addf %56, %58 : vector<8x128xf32>
    %c0_36 = arith.constant 0 : index
    %c0_37 = arith.constant 0 : index
    %60 = vector.load %arg8[%c0_36, %c0_37] : memref<8x128xf32, #tpu.memory_space<vmem>>, vector<8x128xf32>
    tpu.vector_store %arg8[%c0_36, %c0_37], %59 {strides = array<i32>} : memref<8x128xf32, #tpu.memory_space<vmem>>, vector<8x128xf32>,
    return
  }
  func.func @transform_0(%arg0: i32) -> (i32, i32) {
    %c0_i32 = arith.constant 0 : i32
    %c0_i32_0 = arith.constant 0 : i32
    return %arg0, %c0_i32 : i32, i32
  }
  func.func @transform_1(%arg0: i32) -> (i32, i32) {
    %c0_i32 = arith.constant 0 : i32
    %c0_i32_0 = arith.constant 0 : i32
    return %arg0, %c0_i32 : i32, i32
  }
  func.func @transform_2(%arg0: i32) -> (i32, i32, i32) {
    %c0_i32 = arith.constant 0 : i32
    %c0_i32_0 = arith.constant 0 : i32
    %c0_i32_1 = arith.constant 0 : i32
    %c0_i32_2 = arith.constant 0 : i32
    return %c0_i32, %c0_i32_0, %c0_i32_1 : i32, i32, i32
  }
  func.func @transform_3(%arg0: i32) -> (i32, i32) {
    %c0_i32 = arith.constant 0 : i32
    %c0_i32_0 = arith.constant 0 : i32
    %c0_i32_1 = arith.constant 0 : i32
    return %c0_i32, %c0_i32_0 : i32, i32
  }
  func.func @transform_4(%arg0: i32) -> (i32, i32) {
    %c0_i32 = arith.constant 0 : i32
    %c0_i32_0 = arith.constant 0 : i32
    %c0_i32_1 = arith.constant 0 : i32
    return %c0_i32, %c0_i32_0 : i32, i32
  }
  func.func @transform_5(%arg0: i32) -> (i32, i32) {
    %c0_i32 = arith.constant 0 : i32
    %c0_i32_0 = arith.constant 0 : i32
    %c0_i32_1 = arith.constant 0 : i32
    return %c0_i32, %c0_i32_0 : i32, i32
  }
  func.func @transform_6(%arg0: i32) -> (i32, i32) {
    %c0_i32 = arith.constant 0 : i32
    %c0_i32_0 = arith.constant 0 : i32
    %c0_i32_1 = arith.constant 0 : i32
    return %c0_i32, %c0_i32_0 : i32, i32
  }
  func.func @transform_7(%arg0: i32) -> (i32, i32) {
    %c0_i32 = arith.constant 0 : i32
    %c0_i32_0 = arith.constant 0 : i32
    return %arg0, %c0_i32 : i32, i32
  }
}

</mosaic_0001>

<llo_original>
// kernel: tpu_custom_call.1
$region0: #{tpu_custom_call.1}
  #allocation0 [shape = 'u32[]', space=smem, size = 0x4, offset = 0x4, fixed_abs, tag = 'smem constant byte address 0x4 - core index']
  #allocation1 [shape = 'u32[144,128]{1,0:T(1,128)}', space=vmem, size = 0x12000, scoped, tag = 'internal scratch']
  %s0 = inlined_call_operand.vmem [shape: bf16[128,32], index: 0, kind: input, shape index: {}]
  %s1 = inlined_call_operand.hbm [shape: f32[8,16], index: 1, kind: input, shape index: {}]
  %s2 = inlined_call_operand.hbm [shape: f32[1,16,128], index: 2, kind: input, shape index: {}]
  %s3 = inlined_call_operand.vmem [shape: bf16[160,128], index: 3, kind: input, shape index: {}]
  %s4 = inlined_call_operand.vmem [shape: f32[1,128], index: 4, kind: input, shape index: {}]
  %s5 = inlined_call_operand.hbm [shape: f32[128,128], index: 5, kind: input, shape index: {}]
  %s6 = inlined_call_operand.vmem [shape: f32[1,128], index: 6, kind: input, shape index: {}]
  %s7 = inlined_call_operand.hbm [shape: f32[8,128], index: 7, kind: output, shape index: {}]
  %s8 = sld [smem:[#allocation0]]
  $region50: #{tpu_custom_call.1} parent=0
    _
  %s10 = ssub.s32 1, %s8
  %s11 = scalar_select 0, %s10, %s8
  $region1: #{tpu_custom_call.1} parent=0
    #allocation2 [shape = 'u8[4096]{0}', space=vmem, size = 0x1000, scoped, tag = 'input window, operand 1, single buffered']
    #allocation3 [shape = 's32[1]{0}', space=sflag, size = 0x4, scoped, tag = 'scoped memory for tpu_custom_call.1']
    #allocation4 [shape = 's32[1]{0}', space=sflag, size = 0x4, scoped, tag = 'scoped memory for tpu_custom_call.1']
    #allocation5 [shape = 'u8[8192]{0}', space=vmem, size = 0x2000, scoped, tag = 'input window, operand 2, single buffered']
    #allocation6 [shape = 's32[1]{0}', space=sflag, size = 0x4, scoped, tag = 'scoped memory for tpu_custom_call.1']
    #allocation7 [shape = 'u8[65536]{0}', space=vmem, size = 0x10000, scoped, tag = 'input window, operand 5, single buffered']
    #allocation8 [shape = 'u8[4096]{0}', space=vmem, size = 0x1000, scoped, tag = 'output window, operand 0, single buffered']
    %12 = vsyncpa [#allocation3], 0
    %13 = vsyncpa [#allocation6], 0
    %14 = vsyncpa [#allocation4], 0
    // Predicated region
    $region2: #{tpu_custom_call.1} parent=1 // pred_check
      _
    $region3: #{tpu_custom_call.1} parent=1 // pred_check_branch
      %16 = sbr.rel (0) target = $region5
    $region4: #{tpu_custom_call.1} parent=1 // pred_region
      _
    $region5: #{tpu_custom_call.1} parent=1 // pred_fallthru
      _
    // Predicated region
    $region6: #{tpu_custom_call.1} parent=1 // pred_check
      _
    $region7: #{tpu_custom_call.1} parent=1 // pred_check_branch
      %18 = sbr.rel (0) target = $region9
    $region8: #{tpu_custom_call.1} parent=1 // pred_region
      %s20 = ssub.s32 128, 128
      %21 = vsyncadd [#allocation3], %s20
      %s23 = sshll.u32 [#allocation2], 4
      %s24 = int_to_ptr.vmem [resolvable:$true] %s23
      %26 = dma.hbm_to_vmem [thread:$0]  %s1, 128, %s24, [#allocation3]
    $region9: #{tpu_custom_call.1} parent=1 // pred_fallthru
      _
    // Predicated region
    $region10: #{tpu_custom_call.1} parent=1 // pred_check
      _
    $region11: #{tpu_custom_call.1} parent=1 // pred_check_branch
      %28 = sbr.rel (0) target = $region13
    $region12: #{tpu_custom_call.1} parent=1 // pred_region
      %s30 = ssub.s32 256, 256
      %31 = vsyncadd [#allocation6], %s30
      %s32 = sshll.u32 [#allocation5], 4
      %s33 = int_to_ptr.vmem [resolvable:$true] %s32
      %38 = dma.hbm_to_vmem [thread:$0]  %s2, 256, %s33, [#allocation6], 128, 128, 8
    $region13: #{tpu_custom_call.1} parent=1 // pred_fallthru
      _
    // Predicated region
    $region14: #{tpu_custom_call.1} parent=1 // pred_check
      _
    $region15: #{tpu_custom_call.1} parent=1 // pred_check_branch
      %40 = sbr.rel (0) target = $region17
    $region16: #{tpu_custom_call.1} parent=1 // pred_region
      _
    $region17: #{tpu_custom_call.1} parent=1 // pred_fallthru
      _
    // Predicated region
    $region18: #{tpu_custom_call.1} parent=1 // pred_check
      _
    $region19: #{tpu_custom_call.1} parent=1 // pred_check_branch
      %42 = sbr.rel (0) target = $region21
    $region20: #{tpu_custom_call.1} parent=1 // pred_region
      _
    $region21: #{tpu_custom_call.1} parent=1 // pred_fallthru
      _
    // Predicated region
    $region22: #{tpu_custom_call.1} parent=1 // pred_check
      _
    $region23: #{tpu_custom_call.1} parent=1 // pred_check_branch
      %44 = sbr.rel (0) target = $region25
    $region24: #{tpu_custom_call.1} parent=1 // pred_region
      %s46 = ssub.s32 2048, 2048
      %47 = vsyncadd [#allocation6], %s46
      %s48 = sshll.u32 [#allocation7], 4
      %s49 = int_to_ptr.vmem [resolvable:$true] %s48
      %54 = dma.hbm_to_vmem [thread:$0]  %s5, 2048, %s49, [#allocation6], 128, 128, 8
    $region25: #{tpu_custom_call.1} parent=1 // pred_fallthru
      _
    // Predicated region
    $region26: #{tpu_custom_call.1} parent=1 // pred_check
      _
    $region27: #{tpu_custom_call.1} parent=1 // pred_check_branch
      %56 = sbr.rel (0) target = $region29
    $region28: #{tpu_custom_call.1} parent=1 // pred_region
      _
    $region29: #{tpu_custom_call.1} parent=1 // pred_fallthru
      _
    // Predicated region
    $region30: #{tpu_custom_call.1} parent=1 // pred_check
      _
    $region31: #{tpu_custom_call.1} parent=1 // pred_check_branch
      %58 = sbr.rel (0) target = $region33
    $region32: #{tpu_custom_call.1} parent=1 // pred_region
      %59 = dma.done [#allocation3], 128
    $region33: #{tpu_custom_call.1} parent=1 // pred_fallthru
      _
    // Predicated region
    $region34: #{tpu_custom_call.1} parent=1 // pred_check
      _
    $region35: #{tpu_custom_call.1} parent=1 // pred_check_branch
      %61 = sbr.rel (0) target = $region37
    $region36: #{tpu_custom_call.1} parent=1 // pred_region
      %62 = dma.done [#allocation6], 256
    $region37: #{tpu_custom_call.1} parent=1 // pred_fallthru
      _
    // Predicated region
    $region38: #{tpu_custom_call.1} parent=1 // pred_check
      _
    $region39: #{tpu_custom_call.1} parent=1 // pred_check_branch
      %64 = sbr.rel (0) target = $region41
    $region40: #{tpu_custom_call.1} parent=1 // pred_region
      %65 = dma.done [#allocation6], 2048
    $region41: #{tpu_custom_call.1} parent=1 // pred_fallthru
      _
    %v67 = vld [vmem:[%s0] sm:$0xf]
    %v68 = vld [vmem:[%s0 + $0x4] sm:$0xf]
    %v69 = vld [vmem:[%s0 + $0x8] sm:$0xf]
    %v70 = vld [vmem:[%s0 + $0xc] sm:$0xf]
    %v71 = vld [vmem:[%s0 + $0x10] sm:$0xf]
    %v72 = vld [vmem:[%s0 + $0x14] sm:$0xf]
    %v73 = vld [vmem:[%s0 + $0x18] sm:$0xf]
    %v74 = vld [vmem:[%s0 + $0x1c] sm:$0xf]
    %v75 = vld [vmem:[%s0 + $0x20] sm:$0xf]
    %v76 = vld [vmem:[%s0 + $0x24] sm:$0xf]
    %v77 = vld [vmem:[%s0 + $0x28] sm:$0xf]
    %v78 = vld [vmem:[%s0 + $0x2c] sm:$0xf]
    %v79 = vld [vmem:[%s0 + $0x30] sm:$0xf]
    %v80 = vld [vmem:[%s0 + $0x34] sm:$0xf]
    %v81 = vld [vmem:[%s0 + $0x38] sm:$0xf]
    %v82 = vld [vmem:[%s0 + $0x3c] sm:$0xf]
    %v99 = vunpack.c.l.b16 %v67
    %v100 = vunpack.c.l.b16 %v68
    %v101 = vunpack.c.l.b16 %v69
    %v102 = vunpack.c.l.b16 %v70
    %v103 = vunpack.c.l.b16 %v71
    %v104 = vunpack.c.l.b16 %v72
    %v105 = vunpack.c.l.b16 %v73
    %v106 = vunpack.c.l.b16 %v74
    %v107 = vunpack.c.l.b16 %v75
    %v108 = vunpack.c.l.b16 %v76
    %v109 = vunpack.c.l.b16 %v77
    %v110 = vunpack.c.l.b16 %v78
    %v111 = vunpack.c.l.b16 %v79
    %v112 = vunpack.c.l.b16 %v80
    %v113 = vunpack.c.l.b16 %v81
    %v114 = vunpack.c.l.b16 %v82
    %v115 = vpack.c.b16 %v100, %v99
    %v116 = vpack.c.b16 %v102, %v101
    %v117 = vpack.c.b16 %v104, %v103
    %v118 = vpack.c.b16 %v106, %v105
    %v119 = vpack.c.b16 %v108, %v107
    %v120 = vpack.c.b16 %v110, %v109
    %v121 = vpack.c.b16 %v112, %v111
    %v122 = vpack.c.b16 %v114, %v113
    %v123 = vld [vmem:[%s3] sm:$0xf]
    %v124 = vld [vmem:[%s3 + $0x4] sm:$0xf]
    %v125 = vld [vmem:[%s3 + $0x8] sm:$0xf]
    %v126 = vld [vmem:[%s3 + $0xc] sm:$0xf]
    %v127 = vld [vmem:[%s3 + $0x10] sm:$0xf]
    %v128 = vld [vmem:[%s3 + $0x14] sm:$0xf]
    %v129 = vld [vmem:[%s3 + $0x18] sm:$0xf]
    %v130 = vld [vmem:[%s3 + $0x1c] sm:$0xf]
    %vm131 = vsmask.f32 7424
    %v133 = vshrl.u32 %v115, 16
    %v135 = vshll.u32 %v115, 16
    %v137 = vrot.slane %v135, 1
    %v138 = vor.u32 %v133, %v137
    %v140 = vshll.u32 %v116, 16
    %v142 = vrot.slane %v140, 1
    %v143 = vsel %vm131, %v138, %v142
    %v144 = vshrl.u32 %v116, 16
    %v146 = vor.u32 %v144, %v142
    %v148 = vshll.u32 %v117, 16
    %v150 = vrot.slane %v148, 1
    %v151 = vsel %vm131, %v146, %v150
    %v152 = vshrl.u32 %v117, 16
    %v154 = vor.u32 %v152, %v150
    %v156 = vshll.u32 %v118, 16
    %v158 = vrot.slane %v156, 1
    %v159 = vsel %vm131, %v154, %v158
    %v160 = vshrl.u32 %v118, 16
    %v162 = vor.u32 %v160, %v158
    %v164 = vshll.u32 %v119, 16
    %v166 = vrot.slane %v164, 1
    %v167 = vsel %vm131, %v162, %v166
    %v168 = vshrl.u32 %v119, 16
    %v170 = vor.u32 %v168, %v166
    %v172 = vshll.u32 %v120, 16
    %v174 = vrot.slane %v172, 1
    %v175 = vsel %vm131, %v170, %v174
    %v176 = vshrl.u32 %v120, 16
    %v178 = vor.u32 %v176, %v174
    %v180 = vshll.u32 %v121, 16
    %v182 = vrot.slane %v180, 1
    %v183 = vsel %vm131, %v178, %v182
    %v184 = vshrl.u32 %v121, 16
    %v186 = vor.u32 %v184, %v182
    %v188 = vshll.u32 %v122, 16
    %v190 = vrot.slane %v188, 1
    %v191 = vsel %vm131, %v186, %v190
    %v192 = vshrl.u32 %v122, 16
    %v194 = vor.u32 %v192, %v190
    %v196 = vshll.u32 0, 16
    %v198 = vrot.slane %v196, 1
    %v199 = vsel %vm131, %v194, %v198
    %v204 = vunpack.c.l.b16 %v127
    %v205 = vunpack.c.l.b16 %v128
    %v206 = vunpack.c.l.b16 %v129
    %v207 = vunpack.c.l.b16 %v130
    %v208 = vpack.c.b16 %v205, %v204
    %v209 = vpack.c.b16 %v207, %v206
    %vm212 = vcmask 261120
    %v214 = vsel %vm212, %v143, 0
    %v217 = vsel %vm212, %v151, 0
    %v220 = vsel %vm212, %v159, 0
    %v223 = vsel %vm212, %v167, 0
    %v226 = vsel %vm212, %v175, 0
    %v229 = vsel %vm212, %v183, 0
    %v232 = vsel %vm212, %v191, 0
    %v235 = vsel %vm212, %v199, 0
    %237 = vmatprep.subr.bf16.mxu0 0
    %238 = vmatpush1.bf16.msra.mxu0 0
    %239 = vmatprep.subr.bf16.mxu0 0
    %240 = vmatpush1.bf16.msra.mxu0 0
    %241 = vmatprep.subr.bf16.mxu0 0
    %242 = vmatpush1.bf16.msra.mxu0 0
    %243 = vmatprep.subr.bf16.mxu0 0
    %244 = vmatpush1.bf16.msra.mxu0 0
    %245 = vmatprep.subr.bf16.mxu0 0
    %246 = vmatpush1.bf16.msra.mxu0 0
    %247 = vmatprep.subr.bf16.mxu0 0
    %248 = vmatpush1.bf16.msra.mxu0 0
    %249 = vmatprep.subr.bf16.mxu0 0
    %250 = vmatpush1.bf16.msra.mxu0 %v209
    %251 = vmatprep.subr.bf16.mxu0 0
    %252 = vmatpush1.bf16.msra.mxu0 %v208
    %253 = vmatprep.subr.bf16.mxu0 0
    %254 = vmatpush2.bf16.msra.mxu0 0
    %255 = vmatprep.subr.bf16.mxu0 0
    %256 = vmatpush2.bf16.msra.mxu0 0
    %257 = vmatprep.subr.bf16.mxu0 0
    %258 = vmatpush2.bf16.msra.mxu0 0
    %259 = vmatprep.subr.bf16.mxu0 0
    %260 = vmatpush2.bf16.msra.mxu0 0
    %261 = vmatprep.subr.bf16.mxu0 0
    %262 = vmatpush2.bf16.msra.mxu0 0
    %263 = vmatprep.subr.bf16.mxu0 0
    %264 = vmatpush2.bf16.msra.mxu0 0
    %265 = vmatprep.subr.bf16.mxu0 0
    %266 = vmatpush2.bf16.msra.mxu0 0
    %267 = vmatprep.subr.bf16.mxu0 0
    %268 = vmatpush2.bf16.msra.mxu0 0
    %269 = vmatprep.mubr.bf16.mxu0 0
    %270 = vmatmul.mubr.bf16.gmra.mxu0 %v214
    %v271 = vpop.f32.mrf.mxu0
    %v272 = vadd.f32 0.0, %v271
    %v273 = vpop.f32.mrf.mxu0
    %v274 = vpop.f32.mrf.mxu0
    %v275 = vadd.f32 0.0, %v274
    %v276 = vpop.f32.mrf.mxu0
    %277 = vmatprep.mubr.bf16.mxu0 0
    %278 = vmatmul.mubr.bf16.gmra.mxu0 %v217
    %v279 = vpop.f32.mrf.mxu0
    %v280 = vadd.f32 0.0, %v279
    %v281 = vpop.f32.mrf.mxu0
    %v282 = vpop.f32.mrf.mxu0
    %v283 = vadd.f32 0.0, %v282
    %v284 = vpop.f32.mrf.mxu0
    %285 = vmatprep.mubr.bf16.mxu0 0
    %286 = vmatmul.mubr.bf16.gmra.mxu0 %v220
    %v287 = vpop.f32.mrf.mxu0
    %v288 = vadd.f32 0.0, %v287
    %v289 = vpop.f32.mrf.mxu0
    %v290 = vpop.f32.mrf.mxu0
    %v291 = vadd.f32 0.0, %v290
    %v292 = vpop.f32.mrf.mxu0
    %293 = vmatprep.mubr.bf16.mxu0 0
    %294 = vmatmul.mubr.bf16.gmra.mxu0 %v223
    %v295 = vpop.f32.mrf.mxu0
    %v296 = vadd.f32 0.0, %v295
    %v297 = vpop.f32.mrf.mxu0
    %v298 = vpop.f32.mrf.mxu0
    %v299 = vadd.f32 0.0, %v298
    %v300 = vpop.f32.mrf.mxu0
    %301 = vmatprep.mubr.bf16.mxu0 0
    %302 = vmatmul.mubr.bf16.gmra.mxu0 %v226
    %v303 = vpop.f32.mrf.mxu0
    %v304 = vadd.f32 0.0, %v303
    %v305 = vpop.f32.mrf.mxu0
    %v306 = vpop.f32.mrf.mxu0
    %v307 = vadd.f32 0.0, %v306
    %v308 = vpop.f32.mrf.mxu0
    %309 = vmatprep.mubr.bf16.mxu0 0
    %310 = vmatmul.mubr.bf16.gmra.mxu0 %v229
    %v311 = vpop.f32.mrf.mxu0
    %v312 = vadd.f32 0.0, %v311
    %v313 = vpop.f32.mrf.mxu0
    %v314 = vpop.f32.mrf.mxu0
    %v315 = vadd.f32 0.0, %v314
    %v316 = vpop.f32.mrf.mxu0
    %317 = vmatprep.mubr.bf16.mxu0 0
    %318 = vmatmul.mubr.bf16.gmra.mxu0 %v232
    %v319 = vpop.f32.mrf.mxu0
    %v320 = vadd.f32 0.0, %v319
    %v321 = vpop.f32.mrf.mxu0
    %v322 = vpop.f32.mrf.mxu0
    %v323 = vadd.f32 0.0, %v322
    %v324 = vpop.f32.mrf.mxu0
    %325 = vmatprep.mubr.bf16.mxu0 0
    %326 = vmatmul.mubr.bf16.gmra.mxu0 %v235
    %v327 = vpop.f32.mrf.mxu0
    %v328 = vadd.f32 0.0, %v327
    %v329 = vpop.f32.mrf.mxu0
    %v330 = vpop.f32.mrf.mxu0
    %v331 = vadd.f32 0.0, %v330
    %v332 = vpop.f32.mrf.mxu0
    %333 = vdwg.mxu0
    %v338 = vunpack.c.l.b16 %v123
    %v339 = vunpack.c.l.b16 %v124
    %v340 = vunpack.c.l.b16 %v125
    %v341 = vunpack.c.l.b16 %v126
    %v342 = vpack.c.b16 %v339, %v338
    %v343 = vpack.c.b16 %v341, %v340
    %v346 = vsel %vm212, %v115, 0
    %v348 = vsel %vm212, %v116, 0
    %v350 = vsel %vm212, %v117, 0
    %v352 = vsel %vm212, %v118, 0
    %v354 = vsel %vm212, %v119, 0
    %v356 = vsel %vm212, %v120, 0
    %v358 = vsel %vm212, %v121, 0
    %v360 = vsel %vm212, %v122, 0
    %362 = vmatprep.subr.bf16.mxu0 0
    %363 = vmatpush1.bf16.msra.mxu0 0
    %364 = vmatprep.subr.bf16.mxu0 0
    %365 = vmatpush1.bf16.msra.mxu0 0
    %366 = vmatprep.subr.bf16.mxu0 0
    %367 = vmatpush1.bf16.msra.mxu0 0
    %368 = vmatprep.subr.bf16.mxu0 0
    %369 = vmatpush1.bf16.msra.mxu0 0
    %370 = vmatprep.subr.bf16.mxu0 0
    %371 = vmatpush1.bf16.msra.mxu0 0
    %372 = vmatprep.subr.bf16.mxu0 0
    %373 = vmatpush1.bf16.msra.mxu0 0
    %374 = vmatprep.subr.bf16.mxu0 0
    %375 = vmatpush1.bf16.msra.mxu0 %v343
    %376 = vmatprep.subr.bf16.mxu0 0
    %377 = vmatpush1.bf16.msra.mxu0 %v342
    %378 = vmatprep.subr.bf16.mxu0 0
    %379 = vmatpush2.bf16.msra.mxu0 0
    %380 = vmatprep.subr.bf16.mxu0 0
    %381 = vmatpush2.bf16.msra.mxu0 0
    %382 = vmatprep.subr.bf16.mxu0 0
    %383 = vmatpush2.bf16.msra.mxu0 0
    %384 = vmatprep.subr.bf16.mxu0 0
    %385 = vmatpush2.bf16.msra.mxu0 0
    %386 = vmatprep.subr.bf16.mxu0 0
    %387 = vmatpush2.bf16.msra.mxu0 0
    %388 = vmatprep.subr.bf16.mxu0 0
    %389 = vmatpush2.bf16.msra.mxu0 0
    %390 = vmatprep.subr.bf16.mxu0 0
    %391 = vmatpush2.bf16.msra.mxu0 0
    %392 = vmatprep.subr.bf16.mxu0 0
    %393 = vmatpush2.bf16.msra.mxu0 0
    %394 = vmatprep.mubr.bf16.mxu0 0
    %395 = vmatmul.mubr.bf16.gmra.mxu0 %v346
    %v396 = vpop.f32.mrf.mxu0
    %v397 = vadd.f32 %v272, %v396
    %v398 = vpop.f32.mrf.mxu0
    %v399 = vpop.f32.mrf.mxu0
    %v400 = vadd.f32 %v275, %v399
    %v401 = vpop.f32.mrf.mxu0
    %402 = vmatprep.mubr.bf16.mxu0 0
    %403 = vmatmul.mubr.bf16.gmra.mxu0 %v348
    %v404 = vpop.f32.mrf.mxu0
    %v405 = vadd.f32 %v280, %v404
    %v406 = vpop.f32.mrf.mxu0
    %v407 = vpop.f32.mrf.mxu0
    %v408 = vadd.f32 %v283, %v407
    %v409 = vpop.f32.mrf.mxu0
    %410 = vmatprep.mubr.bf16.mxu0 0
    %411 = vmatmul.mubr.bf16.gmra.mxu0 %v350
    %v412 = vpop.f32.mrf.mxu0
    %v413 = vadd.f32 %v288, %v412
    %v414 = vpop.f32.mrf.mxu0
    %v415 = vpop.f32.mrf.mxu0
    %v416 = vadd.f32 %v291, %v415
    %v417 = vpop.f32.mrf.mxu0
    %418 = vmatprep.mubr.bf16.mxu0 0
    %419 = vmatmul.mubr.bf16.gmra.mxu0 %v352
    %v420 = vpop.f32.mrf.mxu0
    %v421 = vadd.f32 %v296, %v420
    %v422 = vpop.f32.mrf.mxu0
    %v423 = vpop.f32.mrf.mxu0
    %v424 = vadd.f32 %v299, %v423
    %v425 = vpop.f32.mrf.mxu0
    %426 = vmatprep.mubr.bf16.mxu0 0
    %427 = vmatmul.mubr.bf16.gmra.mxu0 %v354
    %v428 = vpop.f32.mrf.mxu0
    %v429 = vadd.f32 %v304, %v428
    %v430 = vpop.f32.mrf.mxu0
    %v431 = vpop.f32.mrf.mxu0
    %v432 = vadd.f32 %v307, %v431
    %v433 = vpop.f32.mrf.mxu0
    %434 = vmatprep.mubr.bf16.mxu0 0
    %435 = vmatmul.mubr.bf16.gmra.mxu0 %v356
    %v436 = vpop.f32.mrf.mxu0
    %v437 = vadd.f32 %v312, %v436
    %v438 = vpop.f32.mrf.mxu0
    %v439 = vpop.f32.mrf.mxu0
    %v440 = vadd.f32 %v315, %v439
    %v441 = vpop.f32.mrf.mxu0
    %442 = vmatprep.mubr.bf16.mxu0 0
    %443 = vmatmul.mubr.bf16.gmra.mxu0 %v358
    %v444 = vpop.f32.mrf.mxu0
    %v445 = vadd.f32 %v320, %v444
    %v446 = vpop.f32.mrf.mxu0
    %v447 = vpop.f32.mrf.mxu0
    %v448 = vadd.f32 %v323, %v447
    %v449 = vpop.f32.mrf.mxu0
    %450 = vmatprep.mubr.bf16.mxu0 0
    %451 = vmatmul.mubr.bf16.gmra.mxu0 %v360
    %v452 = vpop.f32.mrf.mxu0
    %v453 = vadd.f32 %v328, %v452
    %v454 = vpop.f32.mrf.mxu0
    %v455 = vpop.f32.mrf.mxu0
    %v456 = vadd.f32 %v331, %v455
    %v457 = vpop.f32.mrf.mxu0
    %458 = vdwg.mxu0
    %v459 = vld [vmem:[%s3 + $0x20] sm:$0xf]
    %v460 = vld [vmem:[%s3 + $0x24] sm:$0xf]
    %v461 = vld [vmem:[%s3 + $0x28] sm:$0xf]
    %v462 = vld [vmem:[%s3 + $0x2c] sm:$0xf]
    %vm464 = vcmask 1046528
    %v465 = vrot.slane %v115, 1
    %v466 = vrot.slane %v116, 1
    %v467 = vsel %vm464, %v465, %v466
    %v468 = vrot.slane %v117, 1
    %v469 = vsel %vm464, %v466, %v468
    %v470 = vrot.slane %v118, 1
    %v471 = vsel %vm464, %v468, %v470
    %v472 = vrot.slane %v119, 1
    %v473 = vsel %vm464, %v470, %v472
    %v474 = vrot.slane %v120, 1
    %v475 = vsel %vm464, %v472, %v474
    %v476 = vrot.slane %v121, 1
    %v477 = vsel %vm464, %v474, %v476
    %v478 = vrot.slane %v122, 1
    %v479 = vsel %vm464, %v476, %v478
    %v480 = vrot.slane 0, 1
    %v481 = vsel %vm464, %v478, %v480
    %v486 = vunpack.c.l.b16 %v459
    %v487 = vunpack.c.l.b16 %v460
    %v488 = vunpack.c.l.b16 %v461
    %v489 = vunpack.c.l.b16 %v462
    %v490 = vpack.c.b16 %v487, %v486
    %v491 = vpack.c.b16 %v489, %v488
    %v495 = vsel %vm212, %v467, 0
    %v498 = vsel %vm212, %v469, 0
    %v501 = vsel %vm212, %v471, 0
    %v504 = vsel %vm212, %v473, 0
    %v507 = vsel %vm212, %v475, 0
    %v510 = vsel %vm212, %v477, 0
    %v513 = vsel %vm212, %v479, 0
    %v516 = vsel %vm212, %v481, 0
    %518 = vmatprep.subr.bf16.mxu0 0
    %519 = vmatpush1.bf16.msra.mxu0 0
    %520 = vmatprep.subr.bf16.mxu0 0
    %521 = vmatpush1.bf16.msra.mxu0 0
    %522 = vmatprep.subr.bf16.mxu0 0
    %523 = vmatpush1.bf16.msra.mxu0 0
    %524 = vmatprep.subr.bf16.mxu0 0
    %525 = vmatpush1.bf16.msra.mxu0 0
    %526 = vmatprep.subr.bf16.mxu0 0
    %527 = vmatpush1.bf16.msra.mxu0 0
    %528 = vmatprep.subr.bf16.mxu0 0
    %529 = vmatpush1.bf16.msra.mxu0 0
    %530 = vmatprep.subr.bf16.mxu0 0
    %531 = vmatpush1.bf16.msra.mxu0 %v491
    %532 = vmatprep.subr.bf16.mxu0 0
    %533 = vmatpush1.bf16.msra.mxu0 %v490
    %534 = vmatprep.subr.bf16.mxu0 0
    %535 = vmatpush2.bf16.msra.mxu0 0
    %536 = vmatprep.subr.bf16.mxu0 0
    %537 = vmatpush2.bf16.msra.mxu0 0
    %538 = vmatprep.subr.bf16.mxu0 0
    %539 = vmatpush2.bf16.msra.mxu0 0
    %540 = vmatprep.subr.bf16.mxu0 0
    %541 = vmatpush2.bf16.msra.mxu0 0
    %542 = vmatprep.subr.bf16.mxu0 0
    %543 = vmatpush2.bf16.msra.mxu0 0
    %544 = vmatprep.subr.bf16.mxu0 0
    %545 = vmatpush2.bf16.msra.mxu0 0
    %546 = vmatprep.subr.bf16.mxu0 0
    %547 = vmatpush2.bf16.msra.mxu0 0
    %548 = vmatprep.subr.bf16.mxu0 0
    %549 = vmatpush2.bf16.msra.mxu0 0
    %550 = vmatprep.mubr.bf16.mxu0 0
    %551 = vmatmul.mubr.bf16.gmra.mxu0 %v495
    %v552 = vpop.f32.mrf.mxu0
    %v553 = vadd.f32 0.0, %v552
    %v554 = vpop.f32.mrf.mxu0
    %v555 = vpop.f32.mrf.mxu0
    %v556 = vadd.f32 0.0, %v555
    %v557 = vpop.f32.mrf.mxu0
    %558 = vmatprep.mubr.bf16.mxu0 0
    %559 = vmatmul.mubr.bf16.gmra.mxu0 %v498
    %v560 = vpop.f32.mrf.mxu0
    %v561 = vadd.f32 0.0, %v560
    %v562 = vpop.f32.mrf.mxu0
    %v563 = vpop.f32.mrf.mxu0
    %v564 = vadd.f32 0.0, %v563
    %v565 = vpop.f32.mrf.mxu0
    %566 = vmatprep.mubr.bf16.mxu0 0
    %567 = vmatmul.mubr.bf16.gmra.mxu0 %v501
    %v568 = vpop.f32.mrf.mxu0
    %v569 = vadd.f32 0.0, %v568
    %v570 = vpop.f32.mrf.mxu0
    %v571 = vpop.f32.mrf.mxu0
    %v572 = vadd.f32 0.0, %v571
    %v573 = vpop.f32.mrf.mxu0
    %574 = vmatprep.mubr.bf16.mxu0 0
    %575 = vmatmul.mubr.bf16.gmra.mxu0 %v504
    %v576 = vpop.f32.mrf.mxu0
    %v577 = vadd.f32 0.0, %v576
    %v578 = vpop.f32.mrf.mxu0
    %v579 = vpop.f32.mrf.mxu0
    %v580 = vadd.f32 0.0, %v579
    %v581 = vpop.f32.mrf.mxu0
    %582 = vmatprep.mubr.bf16.mxu0 0
    %583 = vmatmul.mubr.bf16.gmra.mxu0 %v507
    %v584 = vpop.f32.mrf.mxu0
    %v585 = vadd.f32 0.0, %v584
    %v586 = vpop.f32.mrf.mxu0
    %v587 = vpop.f32.mrf.mxu0
    %v588 = vadd.f32 0.0, %v587
    %v589 = vpop.f32.mrf.mxu0
    %590 = vmatprep.mubr.bf16.mxu0 0
    %591 = vmatmul.mubr.bf16.gmra.mxu0 %v510
    %v592 = vpop.f32.mrf.mxu0
    %v593 = vadd.f32 0.0, %v592
    %v594 = vpop.f32.mrf.mxu0
    %v595 = vpop.f32.mrf.mxu0
    %v596 = vadd.f32 0.0, %v595
    %v597 = vpop.f32.mrf.mxu0
    %598 = vmatprep.mubr.bf16.mxu0 0
    %599 = vmatmul.mubr.bf16.gmra.mxu0 %v513
    %v600 = vpop.f32.mrf.mxu0
    %v601 = vadd.f32 0.0, %v600
    %v602 = vpop.f32.mrf.mxu0
    %v603 = vpop.f32.mrf.mxu0
    %v604 = vadd.f32 0.0, %v603
    %v605 = vpop.f32.mrf.mxu0
    %606 = vmatprep.mubr.bf16.mxu0 0
    %607 = vmatmul.mubr.bf16.gmra.mxu0 %v516
    %v608 = vpop.f32.mrf.mxu0
    %v609 = vadd.f32 0.0, %v608
    %v610 = vpop.f32.mrf.mxu0
    %v611 = vpop.f32.mrf.mxu0
    %v612 = vadd.f32 0.0, %v611
    %v613 = vpop.f32.mrf.mxu0
    %614 = vdwg.mxu0
    %v615 = vadd.f32 %v397, %v553
    %v616 = vadd.f32 %v400, %v556
    %v617 = vadd.f32 %v405, %v561
    %v618 = vadd.f32 %v408, %v564
    %v619 = vadd.f32 %v413, %v569
    %v620 = vadd.f32 %v416, %v572
    %v621 = vadd.f32 %v421, %v577
    %v622 = vadd.f32 %v424, %v580
    %v623 = vadd.f32 %v429, %v585
    %v624 = vadd.f32 %v432, %v588
    %v625 = vadd.f32 %v437, %v593
    %v626 = vadd.f32 %v440, %v596
    %v627 = vadd.f32 %v445, %v601
    %v628 = vadd.f32 %v448, %v604
    %v629 = vadd.f32 %v453, %v609
    %v630 = vadd.f32 %v456, %v612
    %v631 = vld [vmem:[%s3 + $0x30] sm:$0xf]
    %v632 = vld [vmem:[%s3 + $0x34] sm:$0xf]
    %v633 = vld [vmem:[%s3 + $0x38] sm:$0xf]
    %v634 = vld [vmem:[%s3 + $0x3c] sm:$0xf]
    %vm635 = vsmask.f32 6400
    %v636 = vrot.slane %v133, 1
    %v637 = vrot.slane %v135, 2
    %v638 = vor.u32 %v636, %v637
    %v639 = vrot.slane %v144, 1
    %v640 = vrot.slane %v140, 2
    %v641 = vor.u32 %v639, %v640
    %v642 = vsel %vm635, %v638, %v641
    %v643 = vrot.slane %v152, 1
    %v644 = vrot.slane %v148, 2
    %v645 = vor.u32 %v643, %v644
    %v646 = vsel %vm635, %v641, %v645
    %v647 = vrot.slane %v160, 1
    %v648 = vrot.slane %v156, 2
    %v649 = vor.u32 %v647, %v648
    %v650 = vsel %vm635, %v645, %v649
    %v651 = vrot.slane %v168, 1
    %v652 = vrot.slane %v164, 2
    %v653 = vor.u32 %v651, %v652
    %v654 = vsel %vm635, %v649, %v653
    %v655 = vrot.slane %v176, 1
    %v656 = vrot.slane %v172, 2
    %v657 = vor.u32 %v655, %v656
    %v658 = vsel %vm635, %v653, %v657
    %v659 = vrot.slane %v184, 1
    %v660 = vrot.slane %v180, 2
    %v661 = vor.u32 %v659, %v660
    %v662 = vsel %vm635, %v657, %v661
    %v663 = vrot.slane %v192, 1
    %v664 = vrot.slane %v188, 2
    %v665 = vor.u32 %v663, %v664
    %v666 = vsel %vm635, %v661, %v665
    %v667 = vshrl.u32 0, 16
    %v669 = vrot.slane %v667, 1
    %v670 = vrot.slane %v196, 2
    %v671 = vor.u32 %v669, %v670
    %v672 = vsel %vm635, %v665, %v671
    %v677 = vunpack.c.l.b16 %v631
    %v678 = vunpack.c.l.b16 %v632
    %v679 = vunpack.c.l.b16 %v633
    %v680 = vunpack.c.l.b16 %v634
    %v681 = vpack.c.b16 %v678, %v677
    %v682 = vpack.c.b16 %v680, %v679
    %v686 = vsel %vm212, %v642, 0
    %v689 = vsel %vm212, %v646, 0
    %v692 = vsel %vm212, %v650, 0
    %v695 = vsel %vm212, %v654, 0
    %v698 = vsel %vm212, %v658, 0
    %v701 = vsel %vm212, %v662, 0
    %v704 = vsel %vm212, %v666, 0
    %v707 = vsel %vm212, %v672, 0
    %709 = vmatprep.subr.bf16.mxu0 0
    %710 = vmatpush1.bf16.msra.mxu0 0
    %711 = vmatprep.subr.bf16.mxu0 0
    %712 = vmatpush1.bf16.msra.mxu0 0
    %713 = vmatprep.subr.bf16.mxu0 0
    %714 = vmatpush1.bf16.msra.mxu0 0
    %715 = vmatprep.subr.bf16.mxu0 0
    %716 = vmatpush1.bf16.msra.mxu0 0
    %717 = vmatprep.subr.bf16.mxu0 0
    %718 = vmatpush1.bf16.msra.mxu0 0
    %719 = vmatprep.subr.bf16.mxu0 0
    %720 = vmatpush1.bf16.msra.mxu0 0
    %721 = vmatprep.subr.bf16.mxu0 0
    %722 = vmatpush1.bf16.msra.mxu0 %v682
    %723 = vmatprep.subr.bf16.mxu0 0
    %724 = vmatpush1.bf16.msra.mxu0 %v681
    %725 = vmatprep.subr.bf16.mxu0 0
    %726 = vmatpush2.bf16.msra.mxu0 0
    %727 = vmatprep.subr.bf16.mxu0 0
    %728 = vmatpush2.bf16.msra.mxu0 0
    %729 = vmatprep.subr.bf16.mxu0 0
    %730 = vmatpush2.bf16.msra.mxu0 0
    %731 = vmatprep.subr.bf16.mxu0 0
    %732 = vmatpush2.bf16.msra.mxu0 0
    %733 = vmatprep.subr.bf16.mxu0 0
    %734 = vmatpush2.bf16.msra.mxu0 0
    %735 = vmatprep.subr.bf16.mxu0 0
    %736 = vmatpush2.bf16.msra.mxu0 0
    %737 = vmatprep.subr.bf16.mxu0 0
    %738 = vmatpush2.bf16.msra.mxu0 0
    %739 = vmatprep.subr.bf16.mxu0 0
    %740 = vmatpush2.bf16.msra.mxu0 0
    %741 = vmatprep.mubr.bf16.mxu0 0
    %742 = vmatmul.mubr.bf16.gmra.mxu0 %v686
    %v743 = vpop.f32.mrf.mxu0
    %v744 = vadd.f32 0.0, %v743
    %v745 = vpop.f32.mrf.mxu0
    %v746 = vpop.f32.mrf.mxu0
    %v747 = vadd.f32 0.0, %v746
    %v748 = vpop.f32.mrf.mxu0
    %749 = vmatprep.mubr.bf16.mxu0 0
    %750 = vmatmul.mubr.bf16.gmra.mxu0 %v689
    %v751 = vpop.f32.mrf.mxu0
    %v752 = vadd.f32 0.0, %v751
    %v753 = vpop.f32.mrf.mxu0
    %v754 = vpop.f32.mrf.mxu0
    %v755 = vadd.f32 0.0, %v754
    %v756 = vpop.f32.mrf.mxu0
    %757 = vmatprep.mubr.bf16.mxu0 0
    %758 = vmatmul.mubr.bf16.gmra.mxu0 %v692
    %v759 = vpop.f32.mrf.mxu0
    %v760 = vadd.f32 0.0, %v759
    %v761 = vpop.f32.mrf.mxu0
    %v762 = vpop.f32.mrf.mxu0
    %v763 = vadd.f32 0.0, %v762
    %v764 = vpop.f32.mrf.mxu0
    %765 = vmatprep.mubr.bf16.mxu0 0
    %766 = vmatmul.mubr.bf16.gmra.mxu0 %v695
    %v767 = vpop.f32.mrf.mxu0
    %v768 = vadd.f32 0.0, %v767
    %v769 = vpop.f32.mrf.mxu0
    %v770 = vpop.f32.mrf.mxu0
    %v771 = vadd.f32 0.0, %v770
    %v772 = vpop.f32.mrf.mxu0
    %773 = vmatprep.mubr.bf16.mxu0 0
    %774 = vmatmul.mubr.bf16.gmra.mxu0 %v698
    %v775 = vpop.f32.mrf.mxu0
    %v776 = vadd.f32 0.0, %v775
    %v777 = vpop.f32.mrf.mxu0
    %v778 = vpop.f32.mrf.mxu0
    %v779 = vadd.f32 0.0, %v778
    %v780 = vpop.f32.mrf.mxu0
    %781 = vmatprep.mubr.bf16.mxu0 0
    %782 = vmatmul.mubr.bf16.gmra.mxu0 %v701
    %v783 = vpop.f32.mrf.mxu0
    %v784 = vadd.f32 0.0, %v783
    %v785 = vpop.f32.mrf.mxu0
    %v786 = vpop.f32.mrf.mxu0
    %v787 = vadd.f32 0.0, %v786
    %v788 = vpop.f32.mrf.mxu0
    %789 = vmatprep.mubr.bf16.mxu0 0
    %790 = vmatmul.mubr.bf16.gmra.mxu0 %v704
    %v791 = vpop.f32.mrf.mxu0
    %v792 = vadd.f32 0.0, %v791
    %v793 = vpop.f32.mrf.mxu0
    %v794 = vpop.f32.mrf.mxu0
    %v795 = vadd.f32 0.0, %v794
    %v796 = vpop.f32.mrf.mxu0
    %797 = vmatprep.mubr.bf16.mxu0 0
    %798 = vmatmul.mubr.bf16.gmra.mxu0 %v707
    %v799 = vpop.f32.mrf.mxu0
    %v800 = vadd.f32 0.0, %v799
    %v801 = vpop.f32.mrf.mxu0
    %v802 = vpop.f32.mrf.mxu0
    %v803 = vadd.f32 0.0, %v802
    %v804 = vpop.f32.mrf.mxu0
    %805 = vdwg.mxu0
    %v806 = vadd.f32 %v615, %v744
    %v807 = vadd.f32 %v616, %v747
    %v808 = vadd.f32 %v617, %v752
    %v809 = vadd.f32 %v618, %v755
    %v810 = vadd.f32 %v619, %v760
    %v811 = vadd.f32 %v620, %v763
    %v812 = vadd.f32 %v621, %v768
    %v813 = vadd.f32 %v622, %v771
    %v814 = vadd.f32 %v623, %v776
    %v815 = vadd.f32 %v624, %v779
    %v816 = vadd.f32 %v625, %v784
    %v817 = vadd.f32 %v626, %v787
    %v818 = vadd.f32 %v627, %v792
    %v819 = vadd.f32 %v628, %v795
    %v820 = vadd.f32 %v629, %v800
    %v821 = vadd.f32 %v630, %v803
    %v822 = vld [vmem:[%s3 + $0x40] sm:$0xf]
    %v823 = vld [vmem:[%s3 + $0x44] sm:$0xf]
    %v824 = vld [vmem:[%s3 + $0x48] sm:$0xf]
    %v825 = vld [vmem:[%s3 + $0x4c] sm:$0xf]
    %vm826 = vcmask 1045504
    %v827 = vrot.slane %v115, 2
    %v828 = vrot.slane %v116, 2
    %v829 = vsel %vm826, %v827, %v828
    %v830 = vrot.slane %v117, 2
    %v831 = vsel %vm826, %v828, %v830
    %v832 = vrot.slane %v118, 2
    %v833 = vsel %vm826, %v830, %v832
    %v834 = vrot.slane %v119, 2
    %v835 = vsel %vm826, %v832, %v834
    %v836 = vrot.slane %v120, 2
    %v837 = vsel %vm826, %v834, %v836
    %v838 = vrot.slane %v121, 2
    %v839 = vsel %vm826, %v836, %v838
    %v840 = vrot.slane %v122, 2
    %v841 = vsel %vm826, %v838, %v840
    %v842 = vrot.slane 0, 2
    %v843 = vsel %vm826, %v840, %v842
    %v848 = vunpack.c.l.b16 %v822
    %v849 = vunpack.c.l.b16 %v823
    %v850 = vunpack.c.l.b16 %v824
    %v851 = vunpack.c.l.b16 %v825
    %v852 = vpack.c.b16 %v849, %v848
    %v853 = vpack.c.b16 %v851, %v850
    %v857 = vsel %vm212, %v829, 0
    %v860 = vsel %vm212, %v831, 0
    %v863 = vsel %vm212, %v833, 0
    %v866 = vsel %vm212, %v835, 0
    %v869 = vsel %vm212, %v837, 0
    %v872 = vsel %vm212, %v839, 0
    %v875 = vsel %vm212, %v841, 0
    %v878 = vsel %vm212, %v843, 0
    %880 = vmatprep.subr.bf16.mxu0 0
    %881 = vmatpush1.bf16.msra.mxu0 0
    %882 = vmatprep.subr.bf16.mxu0 0
    %883 = vmatpush1.bf16.msra.mxu0 0
    %884 = vmatprep.subr.bf16.mxu0 0
    %885 = vmatpush1.bf16.msra.mxu0 0
    %886 = vmatprep.subr.bf16.mxu0 0
    %887 = vmatpush1.bf16.msra.mxu0 0
    %888 = vmatprep.subr.bf16.mxu0 0
    %889 = vmatpush1.bf16.msra.mxu0 0
    %890 = vmatprep.subr.bf16.mxu0 0
    %891 = vmatpush1.bf16.msra.mxu0 0
    %892 = vmatprep.subr.bf16.mxu0 0
    %893 = vmatpush1.bf16.msra.mxu0 %v853
    %894 = vmatprep.subr.bf16.mxu0 0
    %895 = vmatpush1.bf16.msra.mxu0 %v852
    %896 = vmatprep.subr.bf16.mxu0 0
    %897 = vmatpush2.bf16.msra.mxu0 0
    %898 = vmatprep.subr.bf16.mxu0 0
    %899 = vmatpush2.bf16.msra.mxu0 0
    %900 = vmatprep.subr.bf16.mxu0 0
    %901 = vmatpush2.bf16.msra.mxu0 0
    %902 = vmatprep.subr.bf16.mxu0 0
    %903 = vmatpush2.bf16.msra.mxu0 0
    %904 = vmatprep.subr.bf16.mxu0 0
    %905 = vmatpush2.bf16.msra.mxu0 0
    %906 = vmatprep.subr.bf16.mxu0 0
    %907 = vmatpush2.bf16.msra.mxu0 0
    %908 = vmatprep.subr.bf16.mxu0 0
    %909 = vmatpush2.bf16.msra.mxu0 0
    %910 = vmatprep.subr.bf16.mxu0 0
    %911 = vmatpush2.bf16.msra.mxu0 0
    %912 = vmatprep.mubr.bf16.mxu0 0
    %913 = vmatmul.mubr.bf16.gmra.mxu0 %v857
    %v914 = vpop.f32.mrf.mxu0
    %v915 = vadd.f32 0.0, %v914
    %v916 = vpop.f32.mrf.mxu0
    %v917 = vpop.f32.mrf.mxu0
    %v918 = vadd.f32 0.0, %v917
    %v919 = vpop.f32.mrf.mxu0
    %920 = vmatprep.mubr.bf16.mxu0 0
    %921 = vmatmul.mubr.bf16.gmra.mxu0 %v860
    %v922 = vpop.f32.mrf.mxu0
    %v923 = vadd.f32 0.0, %v922
    %v924 = vpop.f32.mrf.mxu0
    %v925 = vpop.f32.mrf.mxu0
    %v926 = vadd.f32 0.0, %v925
    %v927 = vpop.f32.mrf.mxu0
    %928 = vmatprep.mubr.bf16.mxu0 0
    %929 = vmatmul.mubr.bf16.gmra.mxu0 %v863
    %v930 = vpop.f32.mrf.mxu0
    %v931 = vadd.f32 0.0, %v930
    %v932 = vpop.f32.mrf.mxu0
    %v933 = vpop.f32.mrf.mxu0
    %v934 = vadd.f32 0.0, %v933
    %v935 = vpop.f32.mrf.mxu0
    %936 = vmatprep.mubr.bf16.mxu0 0
    %937 = vmatmul.mubr.bf16.gmra.mxu0 %v866
    %v938 = vpop.f32.mrf.mxu0
    %v939 = vadd.f32 0.0, %v938
    %v940 = vpop.f32.mrf.mxu0
    %v941 = vpop.f32.mrf.mxu0
    %v942 = vadd.f32 0.0, %v941
    %v943 = vpop.f32.mrf.mxu0
    %944 = vmatprep.mubr.bf16.mxu0 0
    %945 = vmatmul.mubr.bf16.gmra.mxu0 %v869
    %v946 = vpop.f32.mrf.mxu0
    %v947 = vadd.f32 0.0, %v946
    %v948 = vpop.f32.mrf.mxu0
    %v949 = vpop.f32.mrf.mxu0
    %v950 = vadd.f32 0.0, %v949
    %v951 = vpop.f32.mrf.mxu0
    %952 = vmatprep.mubr.bf16.mxu0 0
    %953 = vmatmul.mubr.bf16.gmra.mxu0 %v872
    %v954 = vpop.f32.mrf.mxu0
    %v955 = vadd.f32 0.0, %v954
    %v956 = vpop.f32.mrf.mxu0
    %v957 = vpop.f32.mrf.mxu0
    %v958 = vadd.f32 0.0, %v957
    %v959 = vpop.f32.mrf.mxu0
    %960 = vmatprep.mubr.bf16.mxu0 0
    %961 = vmatmul.mubr.bf16.gmra.mxu0 %v875
    %v962 = vpop.f32.mrf.mxu0
    %v963 = vadd.f32 0.0, %v962
    %v964 = vpop.f32.mrf.mxu0
    %v965 = vpop.f32.mrf.mxu0
    %v966 = vadd.f32 0.0, %v965
    %v967 = vpop.f32.mrf.mxu0
    %968 = vmatprep.mubr.bf16.mxu0 0
    %969 = vmatmul.mubr.bf16.gmra.mxu0 %v878
    %v970 = vpop.f32.mrf.mxu0
    %v971 = vadd.f32 0.0, %v970
    %v972 = vpop.f32.mrf.mxu0
    %v973 = vpop.f32.mrf.mxu0
    %v974 = vadd.f32 0.0, %v973
    %v975 = vpop.f32.mrf.mxu0
    %976 = vdwg.mxu0
    %v977 = vadd.f32 %v806, %v915
    %v978 = vadd.f32 %v807, %v918
    %v979 = vadd.f32 %v808, %v923
    %v980 = vadd.f32 %v809, %v926
    %v981 = vadd.f32 %v810, %v931
    %v982 = vadd.f32 %v811, %v934
    %v983 = vadd.f32 %v812, %v939
    %v984 = vadd.f32 %v813, %v942
    %v985 = vadd.f32 %v814, %v947
    %v986 = vadd.f32 %v815, %v950
    %v987 = vadd.f32 %v816, %v955
    %v988 = vadd.f32 %v817, %v958
    %v989 = vadd.f32 %v818, %v963
    %v990 = vadd.f32 %v819, %v966
    %v991 = vadd.f32 %v820, %v971
    %v992 = vadd.f32 %v821, %v974
    %v993 = vld [vmem:[%s4] sm:$0x1]
    %v995 = vlaneseq
    %v996 = vshrl.u32 %v995, 7
    %v997 = vsub.s32 0, %v996
    %v998 = vrot.slane %v993, %v997
    %v1000 = vadd.f32 %v977, %v998
    %v1001 = vadd.f32 %v978, %v998
    %v1002 = vadd.f32 %v979, %v998
    %v1003 = vadd.f32 %v980, %v998
    %v1004 = vadd.f32 %v981, %v998
    %v1005 = vadd.f32 %v982, %v998
    %v1006 = vadd.f32 %v983, %v998
    %v1007 = vadd.f32 %v984, %v998
    %v1008 = vadd.f32 %v985, %v998
    %v1009 = vadd.f32 %v986, %v998
    %v1010 = vadd.f32 %v987, %v998
    %v1011 = vadd.f32 %v988, %v998
    %v1012 = vadd.f32 %v989, %v998
    %v1013 = vadd.f32 %v990, %v998
    %v1014 = vadd.f32 %v991, %v998
    %v1015 = vadd.f32 %v992, %v998
    %vm1016 = vcmp.gt.f32.partialorder %v1000, 0.0
    %vm1017 = vcmp.gt.f32.partialorder %v1001, 0.0
    %vm1018 = vcmp.gt.f32.partialorder %v1002, 0.0
    %vm1019 = vcmp.gt.f32.partialorder %v1003, 0.0
    %vm1020 = vcmp.gt.f32.partialorder %v1004, 0.0
    %vm1021 = vcmp.gt.f32.partialorder %v1005, 0.0
    %vm1022 = vcmp.gt.f32.partialorder %v1006, 0.0
    %vm1023 = vcmp.gt.f32.partialorder %v1007, 0.0
    %vm1024 = vcmp.gt.f32.partialorder %v1008, 0.0
    %vm1025 = vcmp.gt.f32.partialorder %v1009, 0.0
    %vm1026 = vcmp.gt.f32.partialorder %v1010, 0.0
    %vm1027 = vcmp.gt.f32.partialorder %v1011, 0.0
    %vm1028 = vcmp.gt.f32.partialorder %v1012, 0.0
    %vm1029 = vcmp.gt.f32.partialorder %v1013, 0.0
    %vm1030 = vcmp.gt.f32.partialorder %v1014, 0.0
    %vm1031 = vcmp.gt.f32.partialorder %v1015, 0.0
    %v1032 = vmul.f32 %v1000, 0.1
    %v1033 = vmul.f32 %v1001, 0.1
    %v1034 = vmul.f32 %v1002, 0.1
    %v1035 = vmul.f32 %v1003, 0.1
    %v1036 = vmul.f32 %v1004, 0.1
    %v1037 = vmul.f32 %v1005, 0.1
    %v1038 = vmul.f32 %v1006, 0.1
    %v1039 = vmul.f32 %v1007, 0.1
    %v1040 = vmul.f32 %v1008, 0.1
    %v1041 = vmul.f32 %v1009, 0.1
    %v1042 = vmul.f32 %v1010, 0.1
    %v1043 = vmul.f32 %v1011, 0.1
    %v1044 = vmul.f32 %v1012, 0.1
    %v1045 = vmul.f32 %v1013, 0.1
    %v1046 = vmul.f32 %v1014, 0.1
    %v1047 = vmul.f32 %v1015, 0.1
    %v1048 = vsel %vm1016, %v1000, %v1032
    %v1049 = vsel %vm1017, %v1001, %v1033
    %v1050 = vsel %vm1018, %v1002, %v1034
    %v1051 = vsel %vm1019, %v1003, %v1035
    %v1052 = vsel %vm1020, %v1004, %v1036
    %v1053 = vsel %vm1021, %v1005, %v1037
    %v1054 = vsel %vm1022, %v1006, %v1038
    %v1055 = vsel %vm1023, %v1007, %v1039
    %v1056 = vsel %vm1024, %v1008, %v1040
    %v1057 = vsel %vm1025, %v1009, %v1041
    %v1058 = vsel %vm1026, %v1010, %v1042
    %v1059 = vsel %vm1027, %v1011, %v1043
    %v1060 = vsel %vm1028, %v1012, %v1044
    %v1061 = vsel %vm1029, %v1013, %v1045
    %v1062 = vsel %vm1030, %v1014, %v1046
    %v1063 = vsel %vm1031, %v1015, %v1047
    %v1064 = vld [vmem:[#allocation2] sm:$0xff]
    %vm1065 = vcmp.gt.f32.partialorder %v1064, 0.5
    %v1066 = vsel %vm1065, 0.0, -1e+30
    %v1067 = vlaneseq
    %v1068 = vshrl.u32 %v1067, 7
    %v1069 = vsub.s32 0, %v1068
    %v1070 = vrot.slane %v1066, %v1069
    %1072 = vbcast.lane.b32.xlu0 %v1070, 256
    %v1073 = vpop.permute.xlu0 %1072
    %s1075 = sor.u32 256, 8
    %1076 = vbcast.lane.b32.xlu0 %v1070, %s1075
    %v1077 = vpop.permute.xlu0 %1076
    %v1078 = vlaneseq
    %v1079 = vshrl.u32 %v1078, 7
    %v1080 = vsub.s32 1, %v1079
    %v1081 = vrot.slane %v1066, %v1080
    %1083 = vbcast.lane.b32.xlu0 %v1081, 256
    %v1084 = vpop.permute.xlu0 %1083
    %s1086 = sor.u32 256, 8
    %1087 = vbcast.lane.b32.xlu0 %v1081, %s1086
    %v1088 = vpop.permute.xlu0 %1087
    %v1089 = vlaneseq
    %v1090 = vshrl.u32 %v1089, 7
    %v1091 = vsub.s32 2, %v1090
    %v1092 = vrot.slane %v1066, %v1091
    %1094 = vbcast.lane.b32.xlu0 %v1092, 256
    %v1095 = vpop.permute.xlu0 %1094
    %s1097 = sor.u32 256, 8
    %1098 = vbcast.lane.b32.xlu0 %v1092, %s1097
    %v1099 = vpop.permute.xlu0 %1098
    %v1100 = vlaneseq
    %v1101 = vshrl.u32 %v1100, 7
    %v1102 = vsub.s32 3, %v1101
    %v1103 = vrot.slane %v1066, %v1102
    %1105 = vbcast.lane.b32.xlu0 %v1103, 256
    %v1106 = vpop.permute.xlu0 %1105
    %s1108 = sor.u32 256, 8
    %1109 = vbcast.lane.b32.xlu0 %v1103, %s1108
    %v1110 = vpop.permute.xlu0 %1109
    %v1111 = vlaneseq
    %v1112 = vshrl.u32 %v1111, 7
    %v1113 = vsub.s32 4, %v1112
    %v1114 = vrot.slane %v1066, %v1113
    %1116 = vbcast.lane.b32.xlu0 %v1114, 256
    %v1117 = vpop.permute.xlu0 %1116
    %s1119 = sor.u32 256, 8
    %1120 = vbcast.lane.b32.xlu0 %v1114, %s1119
    %v1121 = vpop.permute.xlu0 %1120
    %v1122 = vlaneseq
    %v1123 = vshrl.u32 %v1122, 7
    %v1124 = vsub.s32 5, %v1123
    %v1125 = vrot.slane %v1066, %v1124
    %1127 = vbcast.lane.b32.xlu0 %v1125, 256
    %v1128 = vpop.permute.xlu0 %1127
    %s1130 = sor.u32 256, 8
    %1131 = vbcast.lane.b32.xlu0 %v1125, %s1130
    %v1132 = vpop.permute.xlu0 %1131
    %v1133 = vlaneseq
    %v1134 = vshrl.u32 %v1133, 7
    %v1135 = vsub.s32 6, %v1134
    %v1136 = vrot.slane %v1066, %v1135
    %1138 = vbcast.lane.b32.xlu0 %v1136, 256
    %v1139 = vpop.permute.xlu0 %1138
    %s1141 = sor.u32 256, 8
    %1142 = vbcast.lane.b32.xlu0 %v1136, %s1141
    %v1143 = vpop.permute.xlu0 %1142
    %v1144 = vlaneseq
    %v1145 = vshrl.u32 %v1144, 7
    %v1146 = vsub.s32 7, %v1145
    %v1147 = vrot.slane %v1066, %v1146
    %1149 = vbcast.lane.b32.xlu0 %v1147, 256
    %v1150 = vpop.permute.xlu0 %1149
    %s1152 = sor.u32 256, 8
    %1153 = vbcast.lane.b32.xlu0 %v1147, %s1152
    %v1154 = vpop.permute.xlu0 %1153
    %v1155 = vadd.f32 %v1048, %v1073
    %v1156 = vadd.f32 %v1049, %v1077
    %v1157 = vadd.f32 %v1050, %v1084
    %v1158 = vadd.f32 %v1051, %v1088
    %v1159 = vadd.f32 %v1052, %v1095
    %v1160 = vadd.f32 %v1053, %v1099
    %v1161 = vadd.f32 %v1054, %v1106
    %v1162 = vadd.f32 %v1055, %v1110
    %v1163 = vadd.f32 %v1056, %v1117
    %v1164 = vadd.f32 %v1057, %v1121
    %v1165 = vadd.f32 %v1058, %v1128
    %v1166 = vadd.f32 %v1059, %v1132
    %v1167 = vadd.f32 %v1060, %v1139
    %v1168 = vadd.f32 %v1061, %v1143
    %v1169 = vadd.f32 %v1062, %v1150
    %v1170 = vadd.f32 %v1063, %v1154
    %v1171 = vld [vmem:[#allocation5] sm:$0xff]
    %v1172 = vld [vmem:[#allocation5 + $0x8] sm:$0xff]
    %v1173 = vadd.f32 %v1155, %v1171
    %v1174 = vadd.f32 %v1156, %v1172
    %v1175 = vadd.f32 %v1157, %v1171
    %v1176 = vadd.f32 %v1158, %v1172
    %v1177 = vadd.f32 %v1159, %v1171
    %v1178 = vadd.f32 %v1160, %v1172
    %v1179 = vadd.f32 %v1161, %v1171
    %v1180 = vadd.f32 %v1162, %v1172
    %v1181 = vadd.f32 %v1163, %v1171
    %v1182 = vadd.f32 %v1164, %v1172
    %v1183 = vadd.f32 %v1165, %v1171
    %v1184 = vadd.f32 %v1166, %v1172
    %v1185 = vadd.f32 %v1167, %v1171
    %v1186 = vadd.f32 %v1168, %v1172
    %v1187 = vadd.f32 %v1169, %v1171
    %v1188 = vadd.f32 %v1170, %v1172
    %v1189 = vmax.f32 %v1173, %v1174
    %v1190 = vrot.slane %v1189, 4
    %v1191 = vmax.f32 %v1189, %v1190
    %v1192 = vrot.slane %v1191, 2
    %v1193 = vmax.f32 %v1191, %v1192
    %v1194 = vrot.slane %v1193, 1
    %v1195 = vmax.f32 %v1193, %v1194
    %v1196 = vmax.f32 %v1175, %v1176
    %v1197 = vrot.slane %v1196, 4
    %v1198 = vmax.f32 %v1196, %v1197
    %v1199 = vrot.slane %v1198, 2
    %v1200 = vmax.f32 %v1198, %v1199
    %v1201 = vrot.slane %v1200, 1
    %v1202 = vmax.f32 %v1200, %v1201
    %v1203 = vmax.f32 %v1177, %v1178
    %v1204 = vrot.slane %v1203, 4
    %v1205 = vmax.f32 %v1203, %v1204
    %v1206 = vrot.slane %v1205, 2
    %v1207 = vmax.f32 %v1205, %v1206
    %v1208 = vrot.slane %v1207, 1
    %v1209 = vmax.f32 %v1207, %v1208
    %v1210 = vmax.f32 %v1179, %v1180
    %v1211 = vrot.slane %v1210, 4
    %v1212 = vmax.f32 %v1210, %v1211
    %v1213 = vrot.slane %v1212, 2
    %v1214 = vmax.f32 %v1212, %v1213
    %v1215 = vrot.slane %v1214, 1
    %v1216 = vmax.f32 %v1214, %v1215
    %v1217 = vmax.f32 %v1181, %v1182
    %v1218 = vrot.slane %v1217, 4
    %v1219 = vmax.f32 %v1217, %v1218
    %v1220 = vrot.slane %v1219, 2
    %v1221 = vmax.f32 %v1219, %v1220
    %v1222 = vrot.slane %v1221, 1
    %v1223 = vmax.f32 %v1221, %v1222
    %v1224 = vmax.f32 %v1183, %v1184
    %v1225 = vrot.slane %v1224, 4
    %v1226 = vmax.f32 %v1224, %v1225
    %v1227 = vrot.slane %v1226, 2
    %v1228 = vmax.f32 %v1226, %v1227
    %v1229 = vrot.slane %v1228, 1
    %v1230 = vmax.f32 %v1228, %v1229
    %v1231 = vmax.f32 %v1185, %v1186
    %v1232 = vrot.slane %v1231, 4
    %v1233 = vmax.f32 %v1231, %v1232
    %v1234 = vrot.slane %v1233, 2
    %v1235 = vmax.f32 %v1233, %v1234
    %v1236 = vrot.slane %v1235, 1
    %v1237 = vmax.f32 %v1235, %v1236
    %v1238 = vmax.f32 %v1187, %v1188
    %v1239 = vrot.slane %v1238, 4
    %v1240 = vmax.f32 %v1238, %v1239
    %v1241 = vrot.slane %v1240, 2
    %v1242 = vmax.f32 %v1240, %v1241
    %v1243 = vrot.slane %v1242, 1
    %v1244 = vmax.f32 %v1242, %v1243
    %vm1245 = vcmask 130048
    %v1246 = vsel %vm1245, %v1064, -inf
    %1247 = vmax.xlane.f32.xlu0 %v1246
    %v1248 = vpop.xlane.xlu0 %1247
    %vm1249 = vcmp.gt.f32.partialorder %v1248, 0.5
    %v1250 = vsel %vm1249, 1, 0
    %vm1251 = vcmp.eq.s32.totalorder %v1250, 1
    %vm1260 = vcmask 1041409
    %v1261 = vsel %vm1260, %v1202, %v1195
    %vm1262 = vcmask 1042434
    %v1263 = vsel %vm1262, %v1209, %v1261
    %vm1264 = vcmask 1043459
    %v1265 = vsel %vm1264, %v1216, %v1263
    %vm1266 = vcmask 1044484
    %v1267 = vsel %vm1266, %v1223, %v1265
    %vm1268 = vcmask 1045509
    %v1269 = vsel %vm1268, %v1230, %v1267
    %vm1270 = vcmask 1046534
    %v1271 = vsel %vm1270, %v1237, %v1269
    %vm1272 = vcmask 1047559
    %v1273 = vsel %vm1272, %v1244, %v1271
    %v1275 = vsel %vm1251, %v1273, 0.0
    %v1276 = vld [vmem:[#allocation7] sm:$0xff]
    %v1277 = vld [vmem:[#allocation7 + $0x8] sm:$0xff]
    %v1278 = vld [vmem:[#allocation7 + $0x10] sm:$0xff]
    %v1279 = vld [vmem:[#allocation7 + $0x18] sm:$0xff]
    %v1280 = vld [vmem:[#allocation7 + $0x20] sm:$0xff]
    %v1281 = vld [vmem:[#allocation7 + $0x28] sm:$0xff]
    %v1282 = vld [vmem:[#allocation7 + $0x30] sm:$0xff]
    %v1283 = vld [vmem:[#allocation7 + $0x38] sm:$0xff]
    %v1284 = vld [vmem:[#allocation7 + $0x40] sm:$0xff]
    %v1285 = vld [vmem:[#allocation7 + $0x48] sm:$0xff]
    %v1286 = vld [vmem:[#allocation7 + $0x50] sm:$0xff]
    %v1287 = vld [vmem:[#allocation7 + $0x58] sm:$0xff]
    %v1288 = vld [vmem:[#allocation7 + $0x60] sm:$0xff]
    %v1289 = vld [vmem:[#allocation7 + $0x68] sm:$0xff]
    %v1290 = vld [vmem:[#allocation7 + $0x70] sm:$0xff]
    %v1291 = vld [vmem:[#allocation7 + $0x78] sm:$0xff]
    %v1292 = vld [vmem:[%s6] sm:$0x1]
    %v1294 = vlaneseq
    %v1295 = vshrl.u32 %v1294, 7
    %v1296 = vsub.s32 0, %v1295
    %v1297 = vrot.slane %v1292, %v1296
    %1299 = vmatprep.subr.mxu0 0.0
    %1300 = vmatpush1.msra.mxu0 %v1291
    %1301 = vmatprep.subr.mxu0 0.0
    %1302 = vmatpush1.msra.mxu0 %v1290
    %1303 = vmatprep.subr.mxu0 0.0
    %1304 = vmatpush1.msra.mxu0 %v1289
    %1305 = vmatprep.subr.mxu0 0.0
    %1306 = vmatpush1.msra.mxu0 %v1288
    %1307 = vmatprep.subr.mxu0 0.0
    %1308 = vmatpush1.msra.mxu0 %v1287
    %1309 = vmatprep.subr.mxu0 0.0
    %1310 = vmatpush1.msra.mxu0 %v1286
    %1311 = vmatprep.subr.mxu0 0.0
    %1312 = vmatpush1.msra.mxu0 %v1285
    %1313 = vmatprep.subr.mxu0 0.0
    %1314 = vmatpush1.msra.mxu0 %v1284
    %1315 = vmatprep.subr.mxu0 0.0
    %1316 = vmatpush1.msra.mxu0 %v1283
    %1317 = vmatprep.subr.mxu0 0.0
    %1318 = vmatpush1.msra.mxu0 %v1282
    %1319 = vmatprep.subr.mxu0 0.0
    %1320 = vmatpush1.msra.mxu0 %v1281
    %1321 = vmatprep.subr.mxu0 0.0
    %1322 = vmatpush1.msra.mxu0 %v1280
    %1323 = vmatprep.subr.mxu0 0.0
    %1324 = vmatpush1.msra.mxu0 %v1279
    %1325 = vmatprep.subr.mxu0 0.0
    %1326 = vmatpush1.msra.mxu0 %v1278
    %1327 = vmatprep.subr.mxu0 0.0
    %1328 = vmatpush1.msra.mxu0 %v1277
    %1329 = vmatprep.subr.mxu0 0.0
    %1330 = vmatpush1.msra.mxu0 %v1276
    %1331 = vmatprep.subr.mxu0 0.0
    %1332 = vmatpush2.msra.mxu0 0.0
    %1333 = vmatprep.subr.mxu0 0.0
    %1334 = vmatpush2.msra.mxu0 0.0
    %1335 = vmatprep.subr.mxu0 0.0
    %1336 = vmatpush2.msra.mxu0 0.0
    %1337 = vmatprep.subr.mxu0 0.0
    %1338 = vmatpush2.msra.mxu0 0.0
    %1339 = vmatprep.subr.mxu0 0.0
    %1340 = vmatpush2.msra.mxu0 0.0
    %1341 = vmatprep.subr.mxu0 0.0
    %1342 = vmatpush2.msra.mxu0 0.0
    %1343 = vmatprep.subr.mxu0 0.0
    %1344 = vmatpush2.msra.mxu0 0.0
    %1345 = vmatprep.subr.mxu0 0.0
    %1346 = vmatpush2.msra.mxu0 0.0
    %1347 = vmatprep.subr.mxu0 0.0
    %1348 = vmatpush2.msra.mxu0 0.0
    %1349 = vmatprep.subr.mxu0 0.0
    %1350 = vmatpush2.msra.mxu0 0.0
    %1351 = vmatprep.subr.mxu0 0.0
    %1352 = vmatpush2.msra.mxu0 0.0
    %1353 = vmatprep.subr.mxu0 0.0
    %1354 = vmatpush2.msra.mxu0 0.0
    %1355 = vmatprep.subr.mxu0 0.0
    %1356 = vmatpush2.msra.mxu0 0.0
    %1357 = vmatprep.subr.mxu0 0.0
    %1358 = vmatpush2.msra.mxu0 0.0
    %1359 = vmatprep.subr.mxu0 0.0
    %1360 = vmatpush2.msra.mxu0 0.0
    %1361 = vmatprep.subr.mxu0 0.0
    %1362 = vmatpush2.msra.mxu0 0.0
    %1363 = vmatprep.mubr.f32.mxu0 0.0
    %1364 = vmatmul.mubr.f32.gmra.mxu0 %v1275
    %v1365 = vpop.f32.mrf.mxu0
    %v1366 = vadd.f32 %v1297, %v1365
    %v1367 = vpop.f32.mrf.mxu0
    %1368 = vdwg.mxu0
    %1369 = vst [vmem:[#allocation8] sm:$0xff] %v1366
    // Predicated region
    $region42: #{tpu_custom_call.1} parent=1 // pred_check
      _
    $region43: #{tpu_custom_call.1} parent=1 // pred_check_branch
      %1371 = sbr.rel (0) target = $region45
    $region44: #{tpu_custom_call.1} parent=1 // pred_region
      %s1373 = ssub.s32 128, 128
      %1374 = vsyncadd [#allocation4], %s1373
      %s1376 = sshll.u32 [#allocation8], 4
      %s1377 = int_to_ptr.vmem [resolvable:$true] %s1376
      %1379 = dma.vmem_to_hbm [thread:$0]  %s1377, 128, %s7, [#allocation4]
    $region45: #{tpu_custom_call.1} parent=1 // pred_fallthru
      _
    // Predicated region
    $region46: #{tpu_custom_call.1} parent=1 // pred_check
      _
    $region47: #{tpu_custom_call.1} parent=1 // pred_check_branch
      %1381 = sbr.rel (0) target = $region49
    $region48: #{tpu_custom_call.1} parent=1 // pred_region
      %1382 = dma.done [#allocation4], 128
    $region49: #{tpu_custom_call.1} parent=1 // pred_fallthru
      _
    %1383 = vsyncpa [#allocation3], 1
    %1384 = vsyncpa [#allocation6], 1
    %1385 = vsyncpa [#allocation4], 1

</llo_original>
